<compile_context>
chip_gen: v7x
topology: tpu7x:2x2x1
jax: 0.10.0
libtpu: 0.0.40
codegen_flags: <defaults>
</compile_context>

<pallas_src>
import math
from typing import Union

import jax
import jax.numpy as jnp
from jax.experimental import pallas as pl
from jax.experimental.pallas import tpu as pltpu


# ----------------------------------------------------------------------------
# Weight construction (host/XLA side)
# ----------------------------------------------------------------------------
def _bilinear_weight_matrix(full_size: int, out_size: int, crop_size, offset):
    """(out_size, full_size): bilinear resample of window [offset, offset+crop)."""
    o = jnp.arange(out_size, dtype=jnp.float32)
    crop_f = crop_size.astype(jnp.float32)
    scale = crop_f / out_size
    src = (o + 0.5) * scale - 0.5                       # align_corners=False
    src = jnp.clip(src, 0.0, crop_f - 1.0)
    x0 = jnp.floor(src)
    x1 = jnp.minimum(x0 + 1.0, crop_f - 1.0)
    w1 = src - x0
    w0 = 1.0 - w1
    idx0 = offset + x0.astype(jnp.int32)
    idx1 = offset + x1.astype(jnp.int32)
    cols = jnp.arange(full_size, dtype=jnp.int32)
    m0 = (cols[None, :] == idx0[:, None]).astype(jnp.float32)
    m1 = (cols[None, :] == idx1[:, None]).astype(jnp.float32)
    return w0[:, None] * m0 + w1[:, None] * m1          # rows sum to 1


def _sample_crop_weights(key: jax.Array, crop_ratio: Union[list, tuple, float],
                         out_size: int, H: int, W: int):
    """Draw crop_ratio choice + crop offsets from `key`; return Wh (out,H), Wwt (W,out)."""
    input_size = min(H, W)
    k_choice, k_i, k_j = jax.random.split(key, 3)
    if isinstance(crop_ratio, (list, tuple)):
        ratios = jnp.asarray(crop_ratio, jnp.float32)
        ratio = ratios[jax.random.randint(k_choice, (), 0, ratios.shape[0])]
    else:
        ratio = jnp.float32(crop_ratio)
    # int(ratio * input_size), clamped so out_size <= crop_size <= min(H, W).
    # (The module's crop_size < out_size branch == "crop exactly out_size, no
    #  resize"; with crop_size == out_size the weights are an exact selector.)
    crop_size = jnp.clip((ratio * input_size).astype(jnp.int32), out_size, input_size)
    # RandomCrop.get_params: i in [0, H - crop], j in [0, W - crop]
    i = jax.random.randint(k_i, (), 0, H - crop_size + 1, dtype=jnp.int32)
    j = jax.random.randint(k_j, (), 0, W - crop_size + 1, dtype=jnp.int32)
    wh = _bilinear_weight_matrix(H, out_size, crop_size, i)        # (out, H)
    wwt = _bilinear_weight_matrix(W, out_size, crop_size, j).T     # (W, out)
    return wh, wwt


# ----------------------------------------------------------------------------
# Pallas kernel
# ----------------------------------------------------------------------------
def _crop_resize_kernel(wh_ref, wwt_ref, x_ref, o_ref, z_ref):
    """out = Wh @ plane @ Ww for a block of P planes, as two large MXU matmuls.

    wh_ref : (out, H)      row (height) bilinear weights   -- VMEM resident
    wwt_ref: (W, out)      column (width) bilinear weights -- VMEM resident
    x_ref  : (P*H, W)      P image planes stacked along the sublane axis
    o_ref  : (out, P*out)  lane-dense slab: o_ref[o1, p*out + o2] = Y_p[o1, o2]
    z_ref  : (H, P*out)    VMEM scratch for the W-contracted intermediate
    """
    out_size, H = wh_ref.shape
    P = x_ref.shape[0] // H

    # 1) Contract W for all P planes in one MXU matmul (M = P*H, not 8xH per plane).
    #    precision=HIGHEST keeps the crop_size == out_size selector path exact.
    t = jnp.dot(x_ref[...], wwt_ref[...],
                preferred_element_type=jnp.float32,
                precision=jax.lax.Precision.HIGHEST)               # (P*H, out)

    # 2) Re-pack (P*H, out) -> (H, P*out) via VMEM scratch using only static
    #    slices (no in-kernel minor-dim reshapes), so the H-contraction is one
    #    matmul and the final store is lane-dense.
    for p in range(P):
        z_ref[:, p * out_size:(p + 1) * out_size] = t[p * H:(p + 1) * H, :]

    # 3) Contract H once for all planes; store a lane-dense (out, P*out) slab.
    o_ref[...] = jnp.dot(wh_ref[...], z_ref[...],
                         preferred_element_type=jnp.float32,
                         precision=jax.lax.Precision.HIGHEST).astype(o_ref.dtype)


def _choose_plane_block(n_planes: int, H: int, W: int, out_size: int,
                        vmem_budget_bytes: int = 12 * 1024 * 1024,
                        max_planes: int = 512):
    """Planes per grid step (P) and padded plane count.

    Budget is conservative so double-buffered tiles fit v7x's smaller VMEM
    (64 MiB physical / 32 MiB scoped) as well as v5e/v6e.
    """
    per_plane = 4 * (2 * H * W + 2 * out_size * out_size + H * out_size)
    cap = max(1, min(max_planes, vmem_budget_bytes // per_plane))
    if n_planes <= cap:
        return n_planes, n_planes        # single grid step: block == full array
    # Multi-step: out block lane dim (P*out) must be a multiple of 128 and the
    # x block sublane dim (P*H) a multiple of 8.
    u_lane = 128 // math.gcd(out_size, 128)
    u_sub = 8 // math.gcd(H, 8)
    unit = u_lane * u_sub // math.gcd(u_lane, u_sub)
    P = max(unit, cap // unit * unit)
    n_pad = -(-n_planes // P) * P
    return P, n_pad


def _crop_resize_pallas(x: jnp.ndarray, wh: jnp.ndarray, wwt: jnp.ndarray,
                        out_size: int) -> jnp.ndarray:
    B, C, H, W = x.shape
    N = B * C
    P, n_pad = _choose_plane_block(N, H, W, out_size)

    x2d = x.reshape(N * H, W)
    if n_pad != N:
        x2d = jnp.pad(x2d, ((0, (n_pad - N) * H), (0, 0)))

    out2d = pl.pallas_call(
        _crop_resize_kernel,
        out_shape=jax.ShapeDtypeStruct((out_size, n_pad * out_size), jnp.float32),
        grid=(n_pad // P,),
        in_specs=[
            pl.BlockSpec((out_size, H), lambda n: (0, 0)),   # Wh: stays resident
            pl.BlockSpec((W, out_size), lambda n: (0, 0)),   # Wwt: stays resident
            pl.BlockSpec((P * H, W), lambda n: (n, 0)),      # P planes per step
        ],
        out_specs=pl.BlockSpec((out_size, P * out_size), lambda n: (0, n)),
        scratch_shapes=[pltpu.VMEM((H, P * out_size), jnp.float32)],
        compiler_params=pltpu.CompilerParams(
            dimension_semantics=("parallel",),   # v7x: 2 TCs split the plane axis
            vmem_limit_bytes=32 * 1024 * 1024),
    )(wh, wwt, x2d)

    # Free layout plumbing: (out, n_pad*out)[o1, n*out+o2] -> (B, C, out, out)
    out = out2d.reshape(out_size, n_pad, out_size)      # [o1, n, o2]
    out = jnp.transpose(out, (1, 0, 2))[:N]             # [n, o1, o2]
    return out.reshape(B, C, out_size, out_size)


# ----------------------------------------------------------------------------
# Public wrapper (forward pass of AdaptiveRandomCropTransform)
# ----------------------------------------------------------------------------
def adaptive_random_crop_transform(x: jnp.ndarray,
                                   crop_ratio: Union[list, float],
                                   out_size: int,
                                   key: jax.Array) -> jnp.ndarray:
    """x: (B, C, H, W). Returns (B, C, out_size, out_size) float32."""
    B, C, H, W = x.shape
    if out_size > min(H, W):
        raise ValueError(
            f"out_size={out_size} must be <= min(H, W)={min(H, W)}")
    wh, wwt = _sample_crop_weights(key, crop_ratio, out_size, H, W)
    return _crop_resize_pallas(x.astype(jnp.float32), wh, wwt, out_size)


if __name__ == "__main__":
    key = jax.random.PRNGKey(0)
    kx, kcrop = jax.random.split(key)
    B, C, Hdim, Wdim, OUT = 2, 4, 16, 16, 8
    ratios = [0.6, 0.8, 1.0]
    x = jax.random.normal(kx, (B, C, Hdim, Wdim), dtype=jnp.float32)

    out = adaptive_random_crop_transform(x, crop_ratio=ratios, out_size=OUT, key=kcrop)
    out = jax.block_until_ready(out)

    # Pure-JAX reference using the identical (key-derived) crop weights.
    wh_ref, wwt_ref = _sample_crop_weights(kcrop, ratios, OUT, Hdim, Wdim)
    ref = jnp.einsum("oh,bchw,wq->bcoq", wh_ref, x, wwt_ref,
                     precision=jax.lax.Precision.HIGHEST)

    assert out.shape == (B, C, OUT, OUT)
    assert out.dtype == jnp.float32
    assert bool(jnp.all(jnp.isfinite(out)))
    assert bool(jnp.allclose(out, ref, atol=1e-4, rtol=1e-4))
    print("KERNEL_OK")
</pallas_src>

<mosaic_0001>
module attributes {stable_mosaic.version = 11 : i64} {
  func.func @_crop_resize_kernel(%arg0: i32, %arg1: memref<8x16xf32, #tpu.memory_space<vmem>>, %arg2: memref<16x8xf32, #tpu.memory_space<vmem>>, %arg3: memref<128x16xf32, #tpu.memory_space<vmem>>, %arg4: memref<8x64xf32, #tpu.memory_space<vmem>>, %arg5: memref<16x64xf32, #tpu.memory_space<vmem>>) attributes {dimension_semantics = [#tpu.dimension_semantics<parallel>], iteration_bounds = array<i64: 1>, scalar_prefetch = 0 : i64, scratch_operands = 1 : i64, tpu.core_type = #tpu.core_type<tc>, window_params = [{pipeline_mode = #tpu.pipeline_mode<synchronous>, transform_indices = @transform_0, window_bounds = array<i64: 8, 16>}, {pipeline_mode = #tpu.pipeline_mode<synchronous>, transform_indices = @transform_1, window_bounds = array<i64: 16, 8>}, {transform_indices = @transform_2, window_bounds = array<i64: 128, 16>}, {transform_indices = @transform_3, window_bounds = array<i64: 8, 64>}]} {
    %c0 = arith.constant 0 : index
    %c0_0 = arith.constant 0 : index
    %0 = vector.load %arg3[%c0, %c0_0] : memref<128x16xf32, #tpu.memory_space<vmem>>, vector<128x16xf32>
    %c0_1 = arith.constant 0 : index
    %c0_2 = arith.constant 0 : index
    %1 = vector.load %arg2[%c0_1, %c0_2] : memref<16x8xf32, #tpu.memory_space<vmem>>, vector<16x8xf32>
    %cst = arith.constant dense<0.000000e+00> : vector<128x8xf32>
    %2 = tpu.matmul %0, %1, %cst {dimension_numbers = #tpu.dot_dimension_numbers<[1], [0], [0], [1], [0, 0, 1, 1], [], []>, precision = #tpu.contract_precision<fp32>} : vector<128x16xf32>, vector<16x8xf32>, vector<128x8xf32> -> vector<128x8xf32>
    %3 = vector.extract_strided_slice %2 {offsets = [0, 0], sizes = [16, 8], strides = [1, 1]} : vector<128x8xf32> to vector<16x8xf32>
    %c0_3 = arith.constant 0 : index
    %c0_4 = arith.constant 0 : index
    %4 = vector.load %arg5[%c0_3, %c0_4] : memref<16x64xf32, #tpu.memory_space<vmem>>, vector<16x8xf32>
    tpu.vector_store %arg5[%c0_3, %c0_4], %3 {strides = array<i32>} : memref<16x64xf32, #tpu.memory_space<vmem>>, vector<16x8xf32>,
    %5 = vector.extract_strided_slice %2 {offsets = [16, 0], sizes = [16, 8], strides = [1, 1]} : vector<128x8xf32> to vector<16x8xf32>
    %c0_5 = arith.constant 0 : index
    %c8 = arith.constant 8 : index
    %6 = vector.load %arg5[%c0_5, %c8] : memref<16x64xf32, #tpu.memory_space<vmem>>, vector<16x8xf32>
    tpu.vector_store %arg5[%c0_5, %c8], %5 {strides = array<i32>} : memref<16x64xf32, #tpu.memory_space<vmem>>, vector<16x8xf32>,
    %7 = vector.extract_strided_slice %2 {offsets = [32, 0], sizes = [16, 8], strides = [1, 1]} : vector<128x8xf32> to vector<16x8xf32>
    %c0_6 = arith.constant 0 : index
    %c16 = arith.constant 16 : index
    %8 = vector.load %arg5[%c0_6, %c16] : memref<16x64xf32, #tpu.memory_space<vmem>>, vector<16x8xf32>
    tpu.vector_store %arg5[%c0_6, %c16], %7 {strides = array<i32>} : memref<16x64xf32, #tpu.memory_space<vmem>>, vector<16x8xf32>,
    %9 = vector.extract_strided_slice %2 {offsets = [48, 0], sizes = [16, 8], strides = [1, 1]} : vector<128x8xf32> to vector<16x8xf32>
    %c0_7 = arith.constant 0 : index
    %c24 = arith.constant 24 : index
    %10 = vector.load %arg5[%c0_7, %c24] : memref<16x64xf32, #tpu.memory_space<vmem>>, vector<16x8xf32>
    tpu.vector_store %arg5[%c0_7, %c24], %9 {strides = array<i32>} : memref<16x64xf32, #tpu.memory_space<vmem>>, vector<16x8xf32>,
    %11 = vector.extract_strided_slice %2 {offsets = [64, 0], sizes = [16, 8], strides = [1, 1]} : vector<128x8xf32> to vector<16x8xf32>
    %c0_8 = arith.constant 0 : index
    %c32 = arith.constant 32 : index
    %12 = vector.load %arg5[%c0_8, %c32] : memref<16x64xf32, #tpu.memory_space<vmem>>, vector<16x8xf32>
    tpu.vector_store %arg5[%c0_8, %c32], %11 {strides = array<i32>} : memref<16x64xf32, #tpu.memory_space<vmem>>, vector<16x8xf32>,
    %13 = vector.extract_strided_slice %2 {offsets = [80, 0], sizes = [16, 8], strides = [1, 1]} : vector<128x8xf32> to vector<16x8xf32>
    %c0_9 = arith.constant 0 : index
    %c40 = arith.constant 40 : index
    %14 = vector.load %arg5[%c0_9, %c40] : memref<16x64xf32, #tpu.memory_space<vmem>>, vector<16x8xf32>
    tpu.vector_store %arg5[%c0_9, %c40], %13 {strides = array<i32>} : memref<16x64xf32, #tpu.memory_space<vmem>>, vector<16x8xf32>,
    %15 = vector.extract_strided_slice %2 {offsets = [96, 0], sizes = [16, 8], strides = [1, 1]} : vector<128x8xf32> to vector<16x8xf32>
    %c0_10 = arith.constant 0 : index
    %c48 = arith.constant 48 : index
    %16 = vector.load %arg5[%c0_10, %c48] : memref<16x64xf32, #tpu.memory_space<vmem>>, vector<16x8xf32>
    tpu.vector_store %arg5[%c0_10, %c48], %15 {strides = array<i32>} : memref<16x64xf32, #tpu.memory_space<vmem>>, vector<16x8xf32>,
    %17 = vector.extract_strided_slice %2 {offsets = [112, 0], sizes = [16, 8], strides = [1, 1]} : vector<128x8xf32> to vector<16x8xf32>
    %c0_11 = arith.constant 0 : index
    %c56 = arith.constant 56 : index
    %18 = vector.load %arg5[%c0_11, %c56] : memref<16x64xf32, #tpu.memory_space<vmem>>, vector<16x8xf32>
    tpu.vector_store %arg5[%c0_11, %c56], %17 {strides = array<i32>} : memref<16x64xf32, #tpu.memory_space<vmem>>, vector<16x8xf32>,
    %c0_12 = arith.constant 0 : index
    %c0_13 = arith.constant 0 : index
    %19 = vector.load %arg1[%c0_12, %c0_13] : memref<8x16xf32, #tpu.memory_space<vmem>>, vector<8x16xf32>
    %c0_14 = arith.constant 0 : index
    %c0_15 = arith.constant 0 : index
    %20 = vector.load %arg5[%c0_14, %c0_15] : memref<16x64xf32, #tpu.memory_space<vmem>>, vector<16x64xf32>
    %cst_16 = arith.constant dense<0.000000e+00> : vector<8x64xf32>
    %21 = tpu.matmul %19, %20, %cst_16 {dimension_numbers = #tpu.dot_dimension_numbers<[1], [0], [0], [1], [0, 0, 1, 1], [], []>, precision = #tpu.contract_precision<fp32>} : vector<8x16xf32>, vector<16x64xf32>, vector<8x64xf32> -> vector<8x64xf32>
    %c0_17 = arith.constant 0 : index
    %c0_18 = arith.constant 0 : index
    %22 = vector.load %arg4[%c0_17, %c0_18] : memref<8x64xf32, #tpu.memory_space<vmem>>, vector<8x64xf32>
    tpu.vector_store %arg4[%c0_17, %c0_18], %21 {strides = array<i32>} : memref<8x64xf32, #tpu.memory_space<vmem>>, vector<8x64xf32>,
    return
  }
  func.func @transform_0(%arg0: i32) -> (i32, i32) {
    %c0_i32 = arith.constant 0 : i32
    %c0_i32_0 = arith.constant 0 : i32
    %c0_i32_1 = arith.constant 0 : i32
    return %c0_i32, %c0_i32_0 : i32, i32
  }
  func.func @transform_1(%arg0: i32) -> (i32, i32) {
    %c0_i32 = arith.constant 0 : i32
    %c0_i32_0 = arith.constant 0 : i32
    %c0_i32_1 = arith.constant 0 : i32
    return %c0_i32, %c0_i32_0 : i32, i32
  }
  func.func @transform_2(%arg0: i32) -> (i32, i32) {
    %c0_i32 = arith.constant 0 : i32
    %c0_i32_0 = arith.constant 0 : i32
    return %arg0, %c0_i32 : i32, i32
  }
  func.func @transform_3(%arg0: i32) -> (i32, i32) {
    %c0_i32 = arith.constant 0 : i32
    %c0_i32_0 = arith.constant 0 : i32
    return %c0_i32, %arg0 : i32, i32
  }
}

</mosaic_0001>

<llo_original>
// kernel: tpu_custom_call.1
$region0: #{tpu_custom_call.1}
  #allocation0 [shape = 'u32[]', space=smem, size = 0x4, offset = 0x4, fixed_abs, tag = 'smem constant byte address 0x4 - core index']
  #allocation1 [shape = 'u32[144,128]{1,0:T(1,128)}', space=vmem, size = 0x12000, scoped, tag = 'internal scratch']
  #allocation2 [shape = 'f32[16,64]{1,0:T(8,128)}', space=vmem, size = 0x2000, scoped, tag = 'scratch operand']
  %s0 = inlined_call_operand.vmem [shape: f32[8,16], index: 0, kind: input, shape index: {}]
  %s1 = inlined_call_operand.vmem [shape: f32[16,8], index: 1, kind: input, shape index: {}]
  %s2 = inlined_call_operand.vmem [shape: f32[128,16], index: 2, kind: input, shape index: {}]
  %s3 = inlined_call_operand.hbm [shape: f32[8,64], index: 3, kind: output, shape index: {}]
  %s4 = sld [smem:[#allocation0]]
  $region22: #{tpu_custom_call.1} parent=0
    _
  %s6 = ssub.s32 1, %s4
  %s7 = scalar_select 0, %s6, %s4
  $region1: #{tpu_custom_call.1} parent=0
    #allocation3 [shape = 'u8[4096]{0}', space=vmem, size = 0x1000, scoped, tag = 'output window, operand 0, single buffered']
    #allocation4 [shape = 's32[1]{0}', space=sflag, size = 0x4, scoped, tag = 'scoped memory for tpu_custom_call.1']
    %8 = vsyncpa [#allocation4], 0
    // Predicated region
    $region2: #{tpu_custom_call.1} parent=1 // pred_check
      _
    $region3: #{tpu_custom_call.1} parent=1 // pred_check_branch
      %10 = sbr.rel (0) target = $region5
    $region4: #{tpu_custom_call.1} parent=1 // pred_region
      _
    $region5: #{tpu_custom_call.1} parent=1 // pred_fallthru
      _
    // Predicated region
    $region6: #{tpu_custom_call.1} parent=1 // pred_check
      _
    $region7: #{tpu_custom_call.1} parent=1 // pred_check_branch
      %12 = sbr.rel (0) target = $region9
    $region8: #{tpu_custom_call.1} parent=1 // pred_region
      _
    $region9: #{tpu_custom_call.1} parent=1 // pred_fallthru
      _
    // Predicated region
    $region10: #{tpu_custom_call.1} parent=1 // pred_check
      _
    $region11: #{tpu_custom_call.1} parent=1 // pred_check_branch
      %14 = sbr.rel (0) target = $region13
    $region12: #{tpu_custom_call.1} parent=1 // pred_region
      _
    $region13: #{tpu_custom_call.1} parent=1 // pred_fallthru
      _
    %v15 = vld [vmem:[%s2] sm:$0xff]
    %v16 = vld [vmem:[%s2 + $0x8] sm:$0xff]
    %v17 = vld [vmem:[%s2 + $0x10] sm:$0xff]
    %v18 = vld [vmem:[%s2 + $0x18] sm:$0xff]
    %v19 = vld [vmem:[%s2 + $0x20] sm:$0xff]
    %v20 = vld [vmem:[%s2 + $0x28] sm:$0xff]
    %v21 = vld [vmem:[%s2 + $0x30] sm:$0xff]
    %v22 = vld [vmem:[%s2 + $0x38] sm:$0xff]
    %v23 = vld [vmem:[%s2 + $0x40] sm:$0xff]
    %v24 = vld [vmem:[%s2 + $0x48] sm:$0xff]
    %v25 = vld [vmem:[%s2 + $0x50] sm:$0xff]
    %v26 = vld [vmem:[%s2 + $0x58] sm:$0xff]
    %v27 = vld [vmem:[%s2 + $0x60] sm:$0xff]
    %v28 = vld [vmem:[%s2 + $0x68] sm:$0xff]
    %v29 = vld [vmem:[%s2 + $0x70] sm:$0xff]
    %v30 = vld [vmem:[%s2 + $0x78] sm:$0xff]
    %v31 = vld [vmem:[%s1] sm:$0xff]
    %v32 = vld [vmem:[%s1 + $0x8] sm:$0xff]
    %vm33 = vcmask 130048
    %v35 = vsel %vm33, %v15, 0
    %v38 = vsel %vm33, %v16, 0
    %v41 = vsel %vm33, %v17, 0
    %v44 = vsel %vm33, %v18, 0
    %v47 = vsel %vm33, %v19, 0
    %v50 = vsel %vm33, %v20, 0
    %v53 = vsel %vm33, %v21, 0
    %v56 = vsel %vm33, %v22, 0
    %v59 = vsel %vm33, %v23, 0
    %v62 = vsel %vm33, %v24, 0
    %v65 = vsel %vm33, %v25, 0
    %v68 = vsel %vm33, %v26, 0
    %v71 = vsel %vm33, %v27, 0
    %v74 = vsel %vm33, %v28, 0
    %v77 = vsel %vm33, %v29, 0
    %v80 = vsel %vm33, %v30, 0
    %82 = vmatprep.subr.mxu0 0.0
    %v83 = vand.u32 %v31, 4294901760
    %84 = vmatpush1.msra.mxu0 %v83
    %85 = vmatprep.subr.mxu0 0.0
    %v86 = vand.u32 %v32, 4294901760
    %87 = vmatpush1.msra.mxu0 %v86
    %88 = vmatprep.subr.mxu0 0.0
    %89 = vmatpush1.msra.mxu0 0.0
    %90 = vmatprep.subr.mxu0 0.0
    %91 = vmatpush1.msra.mxu0 0.0
    %92 = vmatprep.subr.mxu0 0.0
    %93 = vmatpush1.msra.mxu0 0.0
    %94 = vmatprep.subr.mxu0 0.0
    %95 = vmatpush1.msra.mxu0 0.0
    %96 = vmatprep.subr.mxu0 0.0
    %97 = vmatpush1.msra.mxu0 0.0
    %98 = vmatprep.subr.mxu0 0.0
    %99 = vmatpush1.msra.mxu0 0.0
    %100 = vmatprep.subr.mxu0 0.0
    %101 = vmatpush1.msra.mxu0 0.0
    %102 = vmatprep.subr.mxu0 0.0
    %103 = vmatpush1.msra.mxu0 0.0
    %104 = vmatprep.subr.mxu0 0.0
    %105 = vmatpush1.msra.mxu0 0.0
    %106 = vmatprep.subr.mxu0 0.0
    %107 = vmatpush1.msra.mxu0 0.0
    %108 = vmatprep.subr.mxu0 0.0
    %109 = vmatpush1.msra.mxu0 0.0
    %110 = vmatprep.subr.mxu0 0.0
    %111 = vmatpush1.msra.mxu0 0.0
    %112 = vmatprep.subr.mxu0 0.0
    %113 = vmatpush1.msra.mxu0 0.0
    %114 = vmatprep.subr.mxu0 0.0
    %115 = vmatpush1.msra.mxu0 0.0
    %116 = vmatprep.subr.mxu0 0.0
    %117 = vmatpush1.msra.mxu0 0.0
    %118 = vmatprep.subr.mxu0 0.0
    %119 = vmatpush1.msra.mxu0 0.0
    %120 = vmatprep.subr.mxu0 0.0
    %121 = vmatpush1.msra.mxu0 0.0
    %122 = vmatprep.subr.mxu0 0.0
    %123 = vmatpush1.msra.mxu0 0.0
    %124 = vmatprep.subr.mxu0 0.0
    %125 = vmatpush1.msra.mxu0 0.0
    %126 = vmatprep.subr.mxu0 0.0
    %127 = vmatpush1.msra.mxu0 0.0
    %128 = vmatprep.subr.mxu0 0.0
    %129 = vmatpush1.msra.mxu0 0.0
    %130 = vmatprep.subr.mxu0 0.0
    %131 = vmatpush1.msra.mxu0 0.0
    %132 = vmatprep.subr.mxu0 0.0
    %133 = vmatpush1.msra.mxu0 0.0
    %134 = vmatprep.subr.mxu0 0.0
    %135 = vmatpush1.msra.mxu0 0.0
    %136 = vmatprep.subr.mxu0 0.0
    %137 = vmatpush1.msra.mxu0 0.0
    %138 = vmatprep.subr.mxu0 0.0
    %139 = vmatpush1.msra.mxu0 0.0
    %140 = vmatprep.subr.mxu0 0.0
    %141 = vmatpush1.msra.mxu0 0.0
    %142 = vmatprep.subr.mxu0 0.0
    %143 = vmatpush1.msra.mxu0 0.0
    %144 = vmatprep.subr.mxu0 0.0
    %145 = vmatpush1.msra.mxu0 0.0
    %146 = vmatprep.subr.mxu0 0.0
    %147 = vmatpush1.msra.mxu0 0.0
    %148 = vmatprep.mubr.f32.mxu0 0.0
    %v149 = vand.u32 %v35, 4294901760
    %v150 = vsub.f32 %v35, %v149
    %v151 = vand.u32 %v150, 4294901760
    %v152 = vsub.f32 %v150, %v151
    %v153 = vand.u32 %v152, 4294901760
    %154 = vmatmul.mubr.f32.gmra.mrb[0].mxu0 %v153
    %v155 = vpop.f32.mrb[0].mxu0
    %v156 = vadd.f32 0.0, %v155
    %v157 = vpop.f32.mrb[0].mxu0
    %158 = vmatprep.mubr.f32.mxu0 0.0
    %v159 = vand.u32 %v38, 4294901760
    %v160 = vsub.f32 %v38, %v159
    %v161 = vand.u32 %v160, 4294901760
    %v162 = vsub.f32 %v160, %v161
    %v163 = vand.u32 %v162, 4294901760
    %164 = vmatmul.mubr.f32.gmra.mrb[0].mxu0 %v163
    %v165 = vpop.f32.mrb[0].mxu0
    %v166 = vadd.f32 0.0, %v165
    %v167 = vpop.f32.mrb[0].mxu0
    %168 = vmatprep.mubr.f32.mxu0 0.0
    %v169 = vand.u32 %v41, 4294901760
    %v170 = vsub.f32 %v41, %v169
    %v171 = vand.u32 %v170, 4294901760
    %v172 = vsub.f32 %v170, %v171
    %v173 = vand.u32 %v172, 4294901760
    %174 = vmatmul.mubr.f32.gmra.mrb[0].mxu0 %v173
    %v175 = vpop.f32.mrb[0].mxu0
    %v176 = vadd.f32 0.0, %v175
    %v177 = vpop.f32.mrb[0].mxu0
    %178 = vmatprep.mubr.f32.mxu0 0.0
    %v179 = vand.u32 %v44, 4294901760
    %v180 = vsub.f32 %v44, %v179
    %v181 = vand.u32 %v180, 4294901760
    %v182 = vsub.f32 %v180, %v181
    %v183 = vand.u32 %v182, 4294901760
    %184 = vmatmul.mubr.f32.gmra.mrb[0].mxu0 %v183
    %v185 = vpop.f32.mrb[0].mxu0
    %v186 = vadd.f32 0.0, %v185
    %v187 = vpop.f32.mrb[0].mxu0
    %188 = vmatprep.mubr.f32.mxu0 0.0
    %v189 = vand.u32 %v47, 4294901760
    %v190 = vsub.f32 %v47, %v189
    %v191 = vand.u32 %v190, 4294901760
    %v192 = vsub.f32 %v190, %v191
    %v193 = vand.u32 %v192, 4294901760
    %194 = vmatmul.mubr.f32.gmra.mrb[0].mxu0 %v193
    %v195 = vpop.f32.mrb[0].mxu0
    %v196 = vadd.f32 0.0, %v195
    %v197 = vpop.f32.mrb[0].mxu0
    %198 = vmatprep.mubr.f32.mxu0 0.0
    %v199 = vand.u32 %v50, 4294901760
    %v200 = vsub.f32 %v50, %v199
    %v201 = vand.u32 %v200, 4294901760
    %v202 = vsub.f32 %v200, %v201
    %v203 = vand.u32 %v202, 4294901760
    %204 = vmatmul.mubr.f32.gmra.mrb[0].mxu0 %v203
    %v205 = vpop.f32.mrb[0].mxu0
    %v206 = vadd.f32 0.0, %v205
    %v207 = vpop.f32.mrb[0].mxu0
    %208 = vmatprep.mubr.f32.mxu0 0.0
    %v209 = vand.u32 %v53, 4294901760
    %v210 = vsub.f32 %v53, %v209
    %v211 = vand.u32 %v210, 4294901760
    %v212 = vsub.f32 %v210, %v211
    %v213 = vand.u32 %v212, 4294901760
    %214 = vmatmul.mubr.f32.gmra.mrb[0].mxu0 %v213
    %v215 = vpop.f32.mrb[0].mxu0
    %v216 = vadd.f32 0.0, %v215
    %v217 = vpop.f32.mrb[0].mxu0
    %218 = vmatprep.mubr.f32.mxu0 0.0
    %v219 = vand.u32 %v56, 4294901760
    %v220 = vsub.f32 %v56, %v219
    %v221 = vand.u32 %v220, 4294901760
    %v222 = vsub.f32 %v220, %v221
    %v223 = vand.u32 %v222, 4294901760
    %224 = vmatmul.mubr.f32.gmra.mrb[0].mxu0 %v223
    %v225 = vpop.f32.mrb[0].mxu0
    %v226 = vadd.f32 0.0, %v225
    %v227 = vpop.f32.mrb[0].mxu0
    %228 = vmatprep.mubr.f32.mxu0 0.0
    %v229 = vand.u32 %v59, 4294901760
    %v230 = vsub.f32 %v59, %v229
    %v231 = vand.u32 %v230, 4294901760
    %v232 = vsub.f32 %v230, %v231
    %v233 = vand.u32 %v232, 4294901760
    %234 = vmatmul.mubr.f32.gmra.mrb[0].mxu0 %v233
    %v235 = vpop.f32.mrb[0].mxu0
    %v236 = vadd.f32 0.0, %v235
    %v237 = vpop.f32.mrb[0].mxu0
    %238 = vmatprep.mubr.f32.mxu0 0.0
    %v239 = vand.u32 %v62, 4294901760
    %v240 = vsub.f32 %v62, %v239
    %v241 = vand.u32 %v240, 4294901760
    %v242 = vsub.f32 %v240, %v241
    %v243 = vand.u32 %v242, 4294901760
    %244 = vmatmul.mubr.f32.gmra.mrb[0].mxu0 %v243
    %v245 = vpop.f32.mrb[0].mxu0
    %v246 = vadd.f32 0.0, %v245
    %v247 = vpop.f32.mrb[0].mxu0
    %248 = vmatprep.mubr.f32.mxu0 0.0
    %v249 = vand.u32 %v65, 4294901760
    %v250 = vsub.f32 %v65, %v249
    %v251 = vand.u32 %v250, 4294901760
    %v252 = vsub.f32 %v250, %v251
    %v253 = vand.u32 %v252, 4294901760
    %254 = vmatmul.mubr.f32.gmra.mrb[0].mxu0 %v253
    %v255 = vpop.f32.mrb[0].mxu0
    %v256 = vadd.f32 0.0, %v255
    %v257 = vpop.f32.mrb[0].mxu0
    %258 = vmatprep.mubr.f32.mxu0 0.0
    %v259 = vand.u32 %v68, 4294901760
    %v260 = vsub.f32 %v68, %v259
    %v261 = vand.u32 %v260, 4294901760
    %v262 = vsub.f32 %v260, %v261
    %v263 = vand.u32 %v262, 4294901760
    %264 = vmatmul.mubr.f32.gmra.mrb[0].mxu0 %v263
    %v265 = vpop.f32.mrb[0].mxu0
    %v266 = vadd.f32 0.0, %v265
    %v267 = vpop.f32.mrb[0].mxu0
    %268 = vmatprep.mubr.f32.mxu0 0.0
    %v269 = vand.u32 %v71, 4294901760
    %v270 = vsub.f32 %v71, %v269
    %v271 = vand.u32 %v270, 4294901760
    %v272 = vsub.f32 %v270, %v271
    %v273 = vand.u32 %v272, 4294901760
    %274 = vmatmul.mubr.f32.gmra.mrb[0].mxu0 %v273
    %v275 = vpop.f32.mrb[0].mxu0
    %v276 = vadd.f32 0.0, %v275
    %v277 = vpop.f32.mrb[0].mxu0
    %278 = vmatprep.mubr.f32.mxu0 0.0
    %v279 = vand.u32 %v74, 4294901760
    %v280 = vsub.f32 %v74, %v279
    %v281 = vand.u32 %v280, 4294901760
    %v282 = vsub.f32 %v280, %v281
    %v283 = vand.u32 %v282, 4294901760
    %284 = vmatmul.mubr.f32.gmra.mrb[0].mxu0 %v283
    %v285 = vpop.f32.mrb[0].mxu0
    %v286 = vadd.f32 0.0, %v285
    %v287 = vpop.f32.mrb[0].mxu0
    %288 = vmatprep.mubr.f32.mxu0 0.0
    %v289 = vand.u32 %v77, 4294901760
    %v290 = vsub.f32 %v77, %v289
    %v291 = vand.u32 %v290, 4294901760
    %v292 = vsub.f32 %v290, %v291
    %v293 = vand.u32 %v292, 4294901760
    %294 = vmatmul.mubr.f32.gmra.mrb[0].mxu0 %v293
    %v295 = vpop.f32.mrb[0].mxu0
    %v296 = vadd.f32 0.0, %v295
    %v297 = vpop.f32.mrb[0].mxu0
    %298 = vmatprep.mubr.f32.mxu0 0.0
    %v299 = vand.u32 %v80, 4294901760
    %v300 = vsub.f32 %v80, %v299
    %v301 = vand.u32 %v300, 4294901760
    %v302 = vsub.f32 %v300, %v301
    %v303 = vand.u32 %v302, 4294901760
    %304 = vmatmul.mubr.f32.gmra.mrb[0].mxu0 %v303
    %v305 = vpop.f32.mrb[0].mxu0
    %v306 = vadd.f32 0.0, %v305
    %v307 = vpop.f32.mrb[0].mxu0
    %308 = vdwg.mxu0
    %309 = vmatprep.subr.mxu0 0.0
    %v310 = vand.u32 %v31, 4294901760
    %v311 = vsub.f32 %v31, %v310
    %v312 = vand.u32 %v311, 4294901760
    %v313 = vsub.f32 %v311, %v312
    %v314 = vand.u32 %v313, 4294901760
    %315 = vmatpush1.msra.mxu0 %v314
    %316 = vmatprep.subr.mxu0 0.0
    %v317 = vand.u32 %v32, 4294901760
    %v318 = vsub.f32 %v32, %v317
    %v319 = vand.u32 %v318, 4294901760
    %v320 = vsub.f32 %v318, %v319
    %v321 = vand.u32 %v320, 4294901760
    %322 = vmatpush1.msra.mxu0 %v321
    %323 = vmatprep.subr.mxu0 0.0
    %324 = vmatpush1.msra.mxu0 0.0
    %325 = vmatprep.subr.mxu0 0.0
    %326 = vmatpush1.msra.mxu0 0.0
    %327 = vmatprep.subr.mxu0 0.0
    %328 = vmatpush1.msra.mxu0 0.0
    %329 = vmatprep.subr.mxu0 0.0
    %330 = vmatpush1.msra.mxu0 0.0
    %331 = vmatprep.subr.mxu0 0.0
    %332 = vmatpush1.msra.mxu0 0.0
    %333 = vmatprep.subr.mxu0 0.0
    %334 = vmatpush1.msra.mxu0 0.0
    %335 = vmatprep.subr.mxu0 0.0
    %336 = vmatpush1.msra.mxu0 0.0
    %337 = vmatprep.subr.mxu0 0.0
    %338 = vmatpush1.msra.mxu0 0.0
    %339 = vmatprep.subr.mxu0 0.0
    %340 = vmatpush1.msra.mxu0 0.0
    %341 = vmatprep.subr.mxu0 0.0
    %342 = vmatpush1.msra.mxu0 0.0
    %343 = vmatprep.subr.mxu0 0.0
    %344 = vmatpush1.msra.mxu0 0.0
    %345 = vmatprep.subr.mxu0 0.0
    %346 = vmatpush1.msra.mxu0 0.0
    %347 = vmatprep.subr.mxu0 0.0
    %348 = vmatpush1.msra.mxu0 0.0
    %349 = vmatprep.subr.mxu0 0.0
    %350 = vmatpush1.msra.mxu0 0.0
    %351 = vmatprep.subr.mxu0 0.0
    %352 = vmatpush1.msra.mxu0 0.0
    %353 = vmatprep.subr.mxu0 0.0
    %354 = vmatpush1.msra.mxu0 0.0
    %355 = vmatprep.subr.mxu0 0.0
    %356 = vmatpush1.msra.mxu0 0.0
    %357 = vmatprep.subr.mxu0 0.0
    %358 = vmatpush1.msra.mxu0 0.0
    %359 = vmatprep.subr.mxu0 0.0
    %360 = vmatpush1.msra.mxu0 0.0
    %361 = vmatprep.subr.mxu0 0.0
    %362 = vmatpush1.msra.mxu0 0.0
    %363 = vmatprep.subr.mxu0 0.0
    %364 = vmatpush1.msra.mxu0 0.0
    %365 = vmatprep.subr.mxu0 0.0
    %366 = vmatpush1.msra.mxu0 0.0
    %367 = vmatprep.subr.mxu0 0.0
    %368 = vmatpush1.msra.mxu0 0.0
    %369 = vmatprep.subr.mxu0 0.0
    %370 = vmatpush1.msra.mxu0 0.0
    %371 = vmatprep.subr.mxu0 0.0
    %372 = vmatpush1.msra.mxu0 0.0
    %373 = vmatprep.subr.mxu0 0.0
    %374 = vmatpush1.msra.mxu0 0.0
    %375 = vmatprep.subr.mxu0 0.0
    %376 = vmatpush1.msra.mxu0 0.0
    %377 = vmatprep.subr.mxu0 0.0
    %378 = vmatpush1.msra.mxu0 0.0
    %379 = vmatprep.subr.mxu0 0.0
    %380 = vmatpush1.msra.mxu0 0.0
    %381 = vmatprep.subr.mxu0 0.0
    %382 = vmatpush1.msra.mxu0 0.0
    %383 = vmatprep.mubr.f32.mxu0 0.0
    %v384 = vand.u32 %v35, 4294901760
    %385 = vmatmul.mubr.f32.gmra.mrb[0].mxu0 %v384
    %v386 = vpop.f32.mrb[0].mxu0
    %v387 = vadd.f32 %v156, %v386
    %v388 = vpop.f32.mrb[0].mxu0
    %389 = vmatprep.mubr.f32.mxu0 0.0
    %v390 = vand.u32 %v38, 4294901760
    %391 = vmatmul.mubr.f32.gmra.mrb[0].mxu0 %v390
    %v392 = vpop.f32.mrb[0].mxu0
    %v393 = vadd.f32 %v166, %v392
    %v394 = vpop.f32.mrb[0].mxu0
    %395 = vmatprep.mubr.f32.mxu0 0.0
    %v396 = vand.u32 %v41, 4294901760
    %397 = vmatmul.mubr.f32.gmra.mrb[0].mxu0 %v396
    %v398 = vpop.f32.mrb[0].mxu0
    %v399 = vadd.f32 %v176, %v398
    %v400 = vpop.f32.mrb[0].mxu0
    %401 = vmatprep.mubr.f32.mxu0 0.0
    %v402 = vand.u32 %v44, 4294901760
    %403 = vmatmul.mubr.f32.gmra.mrb[0].mxu0 %v402
    %v404 = vpop.f32.mrb[0].mxu0
    %v405 = vadd.f32 %v186, %v404
    %v406 = vpop.f32.mrb[0].mxu0
    %407 = vmatprep.mubr.f32.mxu0 0.0
    %v408 = vand.u32 %v47, 4294901760
    %409 = vmatmul.mubr.f32.gmra.mrb[0].mxu0 %v408
    %v410 = vpop.f32.mrb[0].mxu0
    %v411 = vadd.f32 %v196, %v410
    %v412 = vpop.f32.mrb[0].mxu0
    %413 = vmatprep.mubr.f32.mxu0 0.0
    %v414 = vand.u32 %v50, 4294901760
    %415 = vmatmul.mubr.f32.gmra.mrb[0].mxu0 %v414
    %v416 = vpop.f32.mrb[0].mxu0
    %v417 = vadd.f32 %v206, %v416
    %v418 = vpop.f32.mrb[0].mxu0
    %419 = vmatprep.mubr.f32.mxu0 0.0
    %v420 = vand.u32 %v53, 4294901760
    %421 = vmatmul.mubr.f32.gmra.mrb[0].mxu0 %v420
    %v422 = vpop.f32.mrb[0].mxu0
    %v423 = vadd.f32 %v216, %v422
    %v424 = vpop.f32.mrb[0].mxu0
    %425 = vmatprep.mubr.f32.mxu0 0.0
    %v426 = vand.u32 %v56, 4294901760
    %427 = vmatmul.mubr.f32.gmra.mrb[0].mxu0 %v426
    %v428 = vpop.f32.mrb[0].mxu0
    %v429 = vadd.f32 %v226, %v428
    %v430 = vpop.f32.mrb[0].mxu0
    %431 = vmatprep.mubr.f32.mxu0 0.0
    %v432 = vand.u32 %v59, 4294901760
    %433 = vmatmul.mubr.f32.gmra.mrb[0].mxu0 %v432
    %v434 = vpop.f32.mrb[0].mxu0
    %v435 = vadd.f32 %v236, %v434
    %v436 = vpop.f32.mrb[0].mxu0
    %437 = vmatprep.mubr.f32.mxu0 0.0
    %v438 = vand.u32 %v62, 4294901760
    %439 = vmatmul.mubr.f32.gmra.mrb[0].mxu0 %v438
    %v440 = vpop.f32.mrb[0].mxu0
    %v441 = vadd.f32 %v246, %v440
    %v442 = vpop.f32.mrb[0].mxu0
    %443 = vmatprep.mubr.f32.mxu0 0.0
    %v444 = vand.u32 %v65, 4294901760
    %445 = vmatmul.mubr.f32.gmra.mrb[0].mxu0 %v444
    %v446 = vpop.f32.mrb[0].mxu0
    %v447 = vadd.f32 %v256, %v446
    %v448 = vpop.f32.mrb[0].mxu0
    %449 = vmatprep.mubr.f32.mxu0 0.0
    %v450 = vand.u32 %v68, 4294901760
    %451 = vmatmul.mubr.f32.gmra.mrb[0].mxu0 %v450
    %v452 = vpop.f32.mrb[0].mxu0
    %v453 = vadd.f32 %v266, %v452
    %v454 = vpop.f32.mrb[0].mxu0
    %455 = vmatprep.mubr.f32.mxu0 0.0
    %v456 = vand.u32 %v71, 4294901760
    %457 = vmatmul.mubr.f32.gmra.mrb[0].mxu0 %v456
    %v458 = vpop.f32.mrb[0].mxu0
    %v459 = vadd.f32 %v276, %v458
    %v460 = vpop.f32.mrb[0].mxu0
    %461 = vmatprep.mubr.f32.mxu0 0.0
    %v462 = vand.u32 %v74, 4294901760
    %463 = vmatmul.mubr.f32.gmra.mrb[0].mxu0 %v462
    %v464 = vpop.f32.mrb[0].mxu0
    %v465 = vadd.f32 %v286, %v464
    %v466 = vpop.f32.mrb[0].mxu0
    %467 = vmatprep.mubr.f32.mxu0 0.0
    %v468 = vand.u32 %v77, 4294901760
    %469 = vmatmul.mubr.f32.gmra.mrb[0].mxu0 %v468
    %v470 = vpop.f32.mrb[0].mxu0
    %v471 = vadd.f32 %v296, %v470
    %v472 = vpop.f32.mrb[0].mxu0
    %473 = vmatprep.mubr.f32.mxu0 0.0
    %v474 = vand.u32 %v80, 4294901760
    %475 = vmatmul.mubr.f32.gmra.mrb[0].mxu0 %v474
    %v476 = vpop.f32.mrb[0].mxu0
    %v477 = vadd.f32 %v306, %v476
    %v478 = vpop.f32.mrb[0].mxu0
    %479 = vdwg.mxu0
    %480 = vmatprep.subr.mxu0 0.0
    %v481 = vand.u32 %v31, 4294901760
    %v482 = vsub.f32 %v31, %v481
    %483 = vmatpush1.msra.mxu0 %v482
    %484 = vmatprep.subr.mxu0 0.0
    %v485 = vand.u32 %v32, 4294901760
    %v486 = vsub.f32 %v32, %v485
    %487 = vmatpush1.msra.mxu0 %v486
    %488 = vmatprep.subr.mxu0 0.0
    %489 = vmatpush1.msra.mxu0 0.0
    %490 = vmatprep.subr.mxu0 0.0
    %491 = vmatpush1.msra.mxu0 0.0
    %492 = vmatprep.subr.mxu0 0.0
    %493 = vmatpush1.msra.mxu0 0.0
    %494 = vmatprep.subr.mxu0 0.0
    %495 = vmatpush1.msra.mxu0 0.0
    %496 = vmatprep.subr.mxu0 0.0
    %497 = vmatpush1.msra.mxu0 0.0
    %498 = vmatprep.subr.mxu0 0.0
    %499 = vmatpush1.msra.mxu0 0.0
    %500 = vmatprep.subr.mxu0 0.0
    %501 = vmatpush1.msra.mxu0 0.0
    %502 = vmatprep.subr.mxu0 0.0
    %503 = vmatpush1.msra.mxu0 0.0
    %504 = vmatprep.subr.mxu0 0.0
    %505 = vmatpush1.msra.mxu0 0.0
    %506 = vmatprep.subr.mxu0 0.0
    %507 = vmatpush1.msra.mxu0 0.0
    %508 = vmatprep.subr.mxu0 0.0
    %509 = vmatpush1.msra.mxu0 0.0
    %510 = vmatprep.subr.mxu0 0.0
    %511 = vmatpush1.msra.mxu0 0.0
    %512 = vmatprep.subr.mxu0 0.0
    %513 = vmatpush1.msra.mxu0 0.0
    %514 = vmatprep.subr.mxu0 0.0
    %515 = vmatpush1.msra.mxu0 0.0
    %516 = vmatprep.subr.mxu0 0.0
    %517 = vmatpush1.msra.mxu0 0.0
    %518 = vmatprep.subr.mxu0 0.0
    %519 = vmatpush1.msra.mxu0 0.0
    %520 = vmatprep.subr.mxu0 0.0
    %521 = vmatpush1.msra.mxu0 0.0
    %522 = vmatprep.subr.mxu0 0.0
    %523 = vmatpush1.msra.mxu0 0.0
    %524 = vmatprep.subr.mxu0 0.0
    %525 = vmatpush1.msra.mxu0 0.0
    %526 = vmatprep.subr.mxu0 0.0
    %527 = vmatpush1.msra.mxu0 0.0
    %528 = vmatprep.subr.mxu0 0.0
    %529 = vmatpush1.msra.mxu0 0.0
    %530 = vmatprep.subr.mxu0 0.0
    %531 = vmatpush1.msra.mxu0 0.0
    %532 = vmatprep.subr.mxu0 0.0
    %533 = vmatpush1.msra.mxu0 0.0
    %534 = vmatprep.subr.mxu0 0.0
    %535 = vmatpush1.msra.mxu0 0.0
    %536 = vmatprep.subr.mxu0 0.0
    %537 = vmatpush1.msra.mxu0 0.0
    %538 = vmatprep.subr.mxu0 0.0
    %539 = vmatpush1.msra.mxu0 0.0
    %540 = vmatprep.subr.mxu0 0.0
    %541 = vmatpush1.msra.mxu0 0.0
    %542 = vmatprep.subr.mxu0 0.0
    %543 = vmatpush1.msra.mxu0 0.0
    %544 = vmatprep.subr.mxu0 0.0
    %545 = vmatpush1.msra.mxu0 0.0
    %546 = vmatprep.subr.mxu0 0.0
    %547 = vmatpush1.msra.mxu0 0.0
    %548 = vmatprep.mubr.f32.mxu0 0.0
    %v549 = vand.u32 %v35, 4294901760
    %v550 = vsub.f32 %v35, %v549
    %551 = vmatmul.mubr.f32.gmra.mrb[0].mxu0 %v550
    %v552 = vpop.f32.mrb[0].mxu0
    %v553 = vadd.f32 %v387, %v552
    %v554 = vpop.f32.mrb[0].mxu0
    %555 = vmatprep.mubr.f32.mxu0 0.0
    %v556 = vand.u32 %v38, 4294901760
    %v557 = vsub.f32 %v38, %v556
    %558 = vmatmul.mubr.f32.gmra.mrb[0].mxu0 %v557
    %v559 = vpop.f32.mrb[0].mxu0
    %v560 = vadd.f32 %v393, %v559
    %v561 = vpop.f32.mrb[0].mxu0
    %562 = vmatprep.mubr.f32.mxu0 0.0
    %v563 = vand.u32 %v41, 4294901760
    %v564 = vsub.f32 %v41, %v563
    %565 = vmatmul.mubr.f32.gmra.mrb[0].mxu0 %v564
    %v566 = vpop.f32.mrb[0].mxu0
    %v567 = vadd.f32 %v399, %v566
    %v568 = vpop.f32.mrb[0].mxu0
    %569 = vmatprep.mubr.f32.mxu0 0.0
    %v570 = vand.u32 %v44, 4294901760
    %v571 = vsub.f32 %v44, %v570
    %572 = vmatmul.mubr.f32.gmra.mrb[0].mxu0 %v571
    %v573 = vpop.f32.mrb[0].mxu0
    %v574 = vadd.f32 %v405, %v573
    %v575 = vpop.f32.mrb[0].mxu0
    %576 = vmatprep.mubr.f32.mxu0 0.0
    %v577 = vand.u32 %v47, 4294901760
    %v578 = vsub.f32 %v47, %v577
    %579 = vmatmul.mubr.f32.gmra.mrb[0].mxu0 %v578
    %v580 = vpop.f32.mrb[0].mxu0
    %v581 = vadd.f32 %v411, %v580
    %v582 = vpop.f32.mrb[0].mxu0
    %583 = vmatprep.mubr.f32.mxu0 0.0
    %v584 = vand.u32 %v50, 4294901760
    %v585 = vsub.f32 %v50, %v584
    %586 = vmatmul.mubr.f32.gmra.mrb[0].mxu0 %v585
    %v587 = vpop.f32.mrb[0].mxu0
    %v588 = vadd.f32 %v417, %v587
    %v589 = vpop.f32.mrb[0].mxu0
    %590 = vmatprep.mubr.f32.mxu0 0.0
    %v591 = vand.u32 %v53, 4294901760
    %v592 = vsub.f32 %v53, %v591
    %593 = vmatmul.mubr.f32.gmra.mrb[0].mxu0 %v592
    %v594 = vpop.f32.mrb[0].mxu0
    %v595 = vadd.f32 %v423, %v594
    %v596 = vpop.f32.mrb[0].mxu0
    %597 = vmatprep.mubr.f32.mxu0 0.0
    %v598 = vand.u32 %v56, 4294901760
    %v599 = vsub.f32 %v56, %v598
    %600 = vmatmul.mubr.f32.gmra.mrb[0].mxu0 %v599
    %v601 = vpop.f32.mrb[0].mxu0
    %v602 = vadd.f32 %v429, %v601
    %v603 = vpop.f32.mrb[0].mxu0
    %604 = vmatprep.mubr.f32.mxu0 0.0
    %v605 = vand.u32 %v59, 4294901760
    %v606 = vsub.f32 %v59, %v605
    %607 = vmatmul.mubr.f32.gmra.mrb[0].mxu0 %v606
    %v608 = vpop.f32.mrb[0].mxu0
    %v609 = vadd.f32 %v435, %v608
    %v610 = vpop.f32.mrb[0].mxu0
    %611 = vmatprep.mubr.f32.mxu0 0.0
    %v612 = vand.u32 %v62, 4294901760
    %v613 = vsub.f32 %v62, %v612
    %614 = vmatmul.mubr.f32.gmra.mrb[0].mxu0 %v613
    %v615 = vpop.f32.mrb[0].mxu0
    %v616 = vadd.f32 %v441, %v615
    %v617 = vpop.f32.mrb[0].mxu0
    %618 = vmatprep.mubr.f32.mxu0 0.0
    %v619 = vand.u32 %v65, 4294901760
    %v620 = vsub.f32 %v65, %v619
    %621 = vmatmul.mubr.f32.gmra.mrb[0].mxu0 %v620
    %v622 = vpop.f32.mrb[0].mxu0
    %v623 = vadd.f32 %v447, %v622
    %v624 = vpop.f32.mrb[0].mxu0
    %625 = vmatprep.mubr.f32.mxu0 0.0
    %v626 = vand.u32 %v68, 4294901760
    %v627 = vsub.f32 %v68, %v626
    %628 = vmatmul.mubr.f32.gmra.mrb[0].mxu0 %v627
    %v629 = vpop.f32.mrb[0].mxu0
    %v630 = vadd.f32 %v453, %v629
    %v631 = vpop.f32.mrb[0].mxu0
    %632 = vmatprep.mubr.f32.mxu0 0.0
    %v633 = vand.u32 %v71, 4294901760
    %v634 = vsub.f32 %v71, %v633
    %635 = vmatmul.mubr.f32.gmra.mrb[0].mxu0 %v634
    %v636 = vpop.f32.mrb[0].mxu0
    %v637 = vadd.f32 %v459, %v636
    %v638 = vpop.f32.mrb[0].mxu0
    %639 = vmatprep.mubr.f32.mxu0 0.0
    %v640 = vand.u32 %v74, 4294901760
    %v641 = vsub.f32 %v74, %v640
    %642 = vmatmul.mubr.f32.gmra.mrb[0].mxu0 %v641
    %v643 = vpop.f32.mrb[0].mxu0
    %v644 = vadd.f32 %v465, %v643
    %v645 = vpop.f32.mrb[0].mxu0
    %646 = vmatprep.mubr.f32.mxu0 0.0
    %v647 = vand.u32 %v77, 4294901760
    %v648 = vsub.f32 %v77, %v647
    %649 = vmatmul.mubr.f32.gmra.mrb[0].mxu0 %v648
    %v650 = vpop.f32.mrb[0].mxu0
    %v651 = vadd.f32 %v471, %v650
    %v652 = vpop.f32.mrb[0].mxu0
    %653 = vmatprep.mubr.f32.mxu0 0.0
    %v654 = vand.u32 %v80, 4294901760
    %v655 = vsub.f32 %v80, %v654
    %656 = vmatmul.mubr.f32.gmra.mrb[0].mxu0 %v655
    %v657 = vpop.f32.mrb[0].mxu0
    %v658 = vadd.f32 %v477, %v657
    %v659 = vpop.f32.mrb[0].mxu0
    %660 = vdwg.mxu0
    %661 = vmatprep.subr.mxu0 0.0
    %v662 = vand.u32 %v31, 4294901760
    %663 = vmatpush1.msra.mxu0 %v662
    %664 = vmatprep.subr.mxu0 0.0
    %v665 = vand.u32 %v32, 4294901760
    %666 = vmatpush1.msra.mxu0 %v665
    %667 = vmatprep.subr.mxu0 0.0
    %668 = vmatpush1.msra.mxu0 0.0
    %669 = vmatprep.subr.mxu0 0.0
    %670 = vmatpush1.msra.mxu0 0.0
    %671 = vmatprep.subr.mxu0 0.0
    %672 = vmatpush1.msra.mxu0 0.0
    %673 = vmatprep.subr.mxu0 0.0
    %674 = vmatpush1.msra.mxu0 0.0
    %675 = vmatprep.subr.mxu0 0.0
    %676 = vmatpush1.msra.mxu0 0.0
    %677 = vmatprep.subr.mxu0 0.0
    %678 = vmatpush1.msra.mxu0 0.0
    %679 = vmatprep.subr.mxu0 0.0
    %680 = vmatpush1.msra.mxu0 0.0
    %681 = vmatprep.subr.mxu0 0.0
    %682 = vmatpush1.msra.mxu0 0.0
    %683 = vmatprep.subr.mxu0 0.0
    %684 = vmatpush1.msra.mxu0 0.0
    %685 = vmatprep.subr.mxu0 0.0
    %686 = vmatpush1.msra.mxu0 0.0
    %687 = vmatprep.subr.mxu0 0.0
    %688 = vmatpush1.msra.mxu0 0.0
    %689 = vmatprep.subr.mxu0 0.0
    %690 = vmatpush1.msra.mxu0 0.0
    %691 = vmatprep.subr.mxu0 0.0
    %692 = vmatpush1.msra.mxu0 0.0
    %693 = vmatprep.subr.mxu0 0.0
    %694 = vmatpush1.msra.mxu0 0.0
    %695 = vmatprep.subr.mxu0 0.0
    %696 = vmatpush1.msra.mxu0 0.0
    %697 = vmatprep.subr.mxu0 0.0
    %698 = vmatpush1.msra.mxu0 0.0
    %699 = vmatprep.subr.mxu0 0.0
    %700 = vmatpush1.msra.mxu0 0.0
    %701 = vmatprep.subr.mxu0 0.0
    %702 = vmatpush1.msra.mxu0 0.0
    %703 = vmatprep.subr.mxu0 0.0
    %704 = vmatpush1.msra.mxu0 0.0
    %705 = vmatprep.subr.mxu0 0.0
    %706 = vmatpush1.msra.mxu0 0.0
    %707 = vmatprep.subr.mxu0 0.0
    %708 = vmatpush1.msra.mxu0 0.0
    %709 = vmatprep.subr.mxu0 0.0
    %710 = vmatpush1.msra.mxu0 0.0
    %711 = vmatprep.subr.mxu0 0.0
    %712 = vmatpush1.msra.mxu0 0.0
    %713 = vmatprep.subr.mxu0 0.0
    %714 = vmatpush1.msra.mxu0 0.0
    %715 = vmatprep.subr.mxu0 0.0
    %716 = vmatpush1.msra.mxu0 0.0
    %717 = vmatprep.subr.mxu0 0.0
    %718 = vmatpush1.msra.mxu0 0.0
    %719 = vmatprep.subr.mxu0 0.0
    %720 = vmatpush1.msra.mxu0 0.0
    %721 = vmatprep.subr.mxu0 0.0
    %722 = vmatpush1.msra.mxu0 0.0
    %723 = vmatprep.subr.mxu0 0.0
    %724 = vmatpush1.msra.mxu0 0.0
    %725 = vmatprep.subr.mxu0 0.0
    %726 = vmatpush1.msra.mxu0 0.0
    %727 = vmatprep.mubr.f32.mxu0 0.0
    %v728 = vand.u32 %v35, 4294901760
    %v729 = vsub.f32 %v35, %v728
    %v730 = vand.u32 %v729, 4294901760
    %731 = vmatmul.mubr.f32.gmra.mrb[0].mxu0 %v730
    %v732 = vpop.f32.mrb[0].mxu0
    %v733 = vadd.f32 %v553, %v732
    %v734 = vpop.f32.mrb[0].mxu0
    %735 = vmatprep.mubr.f32.mxu0 0.0
    %v736 = vand.u32 %v38, 4294901760
    %v737 = vsub.f32 %v38, %v736
    %v738 = vand.u32 %v737, 4294901760
    %739 = vmatmul.mubr.f32.gmra.mrb[0].mxu0 %v738
    %v740 = vpop.f32.mrb[0].mxu0
    %v741 = vadd.f32 %v560, %v740
    %v742 = vpop.f32.mrb[0].mxu0
    %743 = vmatprep.mubr.f32.mxu0 0.0
    %v744 = vand.u32 %v41, 4294901760
    %v745 = vsub.f32 %v41, %v744
    %v746 = vand.u32 %v745, 4294901760
    %747 = vmatmul.mubr.f32.gmra.mrb[0].mxu0 %v746
    %v748 = vpop.f32.mrb[0].mxu0
    %v749 = vadd.f32 %v567, %v748
    %v750 = vpop.f32.mrb[0].mxu0
    %751 = vmatprep.mubr.f32.mxu0 0.0
    %v752 = vand.u32 %v44, 4294901760
    %v753 = vsub.f32 %v44, %v752
    %v754 = vand.u32 %v753, 4294901760
    %755 = vmatmul.mubr.f32.gmra.mrb[0].mxu0 %v754
    %v756 = vpop.f32.mrb[0].mxu0
    %v757 = vadd.f32 %v574, %v756
    %v758 = vpop.f32.mrb[0].mxu0
    %759 = vmatprep.mubr.f32.mxu0 0.0
    %v760 = vand.u32 %v47, 4294901760
    %v761 = vsub.f32 %v47, %v760
    %v762 = vand.u32 %v761, 4294901760
    %763 = vmatmul.mubr.f32.gmra.mrb[0].mxu0 %v762
    %v764 = vpop.f32.mrb[0].mxu0
    %v765 = vadd.f32 %v581, %v764
    %v766 = vpop.f32.mrb[0].mxu0
    %767 = vmatprep.mubr.f32.mxu0 0.0
    %v768 = vand.u32 %v50, 4294901760
    %v769 = vsub.f32 %v50, %v768
    %v770 = vand.u32 %v769, 4294901760
    %771 = vmatmul.mubr.f32.gmra.mrb[0].mxu0 %v770
    %v772 = vpop.f32.mrb[0].mxu0
    %v773 = vadd.f32 %v588, %v772
    %v774 = vpop.f32.mrb[0].mxu0
    %775 = vmatprep.mubr.f32.mxu0 0.0
    %v776 = vand.u32 %v53, 4294901760
    %v777 = vsub.f32 %v53, %v776
    %v778 = vand.u32 %v777, 4294901760
    %779 = vmatmul.mubr.f32.gmra.mrb[0].mxu0 %v778
    %v780 = vpop.f32.mrb[0].mxu0
    %v781 = vadd.f32 %v595, %v780
    %v782 = vpop.f32.mrb[0].mxu0
    %783 = vmatprep.mubr.f32.mxu0 0.0
    %v784 = vand.u32 %v56, 4294901760
    %v785 = vsub.f32 %v56, %v784
    %v786 = vand.u32 %v785, 4294901760
    %787 = vmatmul.mubr.f32.gmra.mrb[0].mxu0 %v786
    %v788 = vpop.f32.mrb[0].mxu0
    %v789 = vadd.f32 %v602, %v788
    %v790 = vpop.f32.mrb[0].mxu0
    %791 = vmatprep.mubr.f32.mxu0 0.0
    %v792 = vand.u32 %v59, 4294901760
    %v793 = vsub.f32 %v59, %v792
    %v794 = vand.u32 %v793, 4294901760
    %795 = vmatmul.mubr.f32.gmra.mrb[0].mxu0 %v794
    %v796 = vpop.f32.mrb[0].mxu0
    %v797 = vadd.f32 %v609, %v796
    %v798 = vpop.f32.mrb[0].mxu0
    %799 = vmatprep.mubr.f32.mxu0 0.0
    %v800 = vand.u32 %v62, 4294901760
    %v801 = vsub.f32 %v62, %v800
    %v802 = vand.u32 %v801, 4294901760
    %803 = vmatmul.mubr.f32.gmra.mrb[0].mxu0 %v802
    %v804 = vpop.f32.mrb[0].mxu0
    %v805 = vadd.f32 %v616, %v804
    %v806 = vpop.f32.mrb[0].mxu0
    %807 = vmatprep.mubr.f32.mxu0 0.0
    %v808 = vand.u32 %v65, 4294901760
    %v809 = vsub.f32 %v65, %v808
    %v810 = vand.u32 %v809, 4294901760
    %811 = vmatmul.mubr.f32.gmra.mrb[0].mxu0 %v810
    %v812 = vpop.f32.mrb[0].mxu0
    %v813 = vadd.f32 %v623, %v812
    %v814 = vpop.f32.mrb[0].mxu0
    %815 = vmatprep.mubr.f32.mxu0 0.0
    %v816 = vand.u32 %v68, 4294901760
    %v817 = vsub.f32 %v68, %v816
    %v818 = vand.u32 %v817, 4294901760
    %819 = vmatmul.mubr.f32.gmra.mrb[0].mxu0 %v818
    %v820 = vpop.f32.mrb[0].mxu0
    %v821 = vadd.f32 %v630, %v820
    %v822 = vpop.f32.mrb[0].mxu0
    %823 = vmatprep.mubr.f32.mxu0 0.0
    %v824 = vand.u32 %v71, 4294901760
    %v825 = vsub.f32 %v71, %v824
    %v826 = vand.u32 %v825, 4294901760
    %827 = vmatmul.mubr.f32.gmra.mrb[0].mxu0 %v826
    %v828 = vpop.f32.mrb[0].mxu0
    %v829 = vadd.f32 %v637, %v828
    %v830 = vpop.f32.mrb[0].mxu0
    %831 = vmatprep.mubr.f32.mxu0 0.0
    %v832 = vand.u32 %v74, 4294901760
    %v833 = vsub.f32 %v74, %v832
    %v834 = vand.u32 %v833, 4294901760
    %835 = vmatmul.mubr.f32.gmra.mrb[0].mxu0 %v834
    %v836 = vpop.f32.mrb[0].mxu0
    %v837 = vadd.f32 %v644, %v836
    %v838 = vpop.f32.mrb[0].mxu0
    %839 = vmatprep.mubr.f32.mxu0 0.0
    %v840 = vand.u32 %v77, 4294901760
    %v841 = vsub.f32 %v77, %v840
    %v842 = vand.u32 %v841, 4294901760
    %843 = vmatmul.mubr.f32.gmra.mrb[0].mxu0 %v842
    %v844 = vpop.f32.mrb[0].mxu0
    %v845 = vadd.f32 %v651, %v844
    %v846 = vpop.f32.mrb[0].mxu0
    %847 = vmatprep.mubr.f32.mxu0 0.0
    %v848 = vand.u32 %v80, 4294901760
    %v849 = vsub.f32 %v80, %v848
    %v850 = vand.u32 %v849, 4294901760
    %851 = vmatmul.mubr.f32.gmra.mrb[0].mxu0 %v850
    %v852 = vpop.f32.mrb[0].mxu0
    %v853 = vadd.f32 %v658, %v852
    %v854 = vpop.f32.mrb[0].mxu0
    %855 = vdwg.mxu0
    %856 = vmatprep.subr.mxu0 0.0
    %v857 = vand.u32 %v31, 4294901760
    %v858 = vsub.f32 %v31, %v857
    %v859 = vand.u32 %v858, 4294901760
    %860 = vmatpush1.msra.mxu0 %v859
    %861 = vmatprep.subr.mxu0 0.0
    %v862 = vand.u32 %v32, 4294901760
    %v863 = vsub.f32 %v32, %v862
    %v864 = vand.u32 %v863, 4294901760
    %865 = vmatpush1.msra.mxu0 %v864
    %866 = vmatprep.subr.mxu0 0.0
    %867 = vmatpush1.msra.mxu0 0.0
    %868 = vmatprep.subr.mxu0 0.0
    %869 = vmatpush1.msra.mxu0 0.0
    %870 = vmatprep.subr.mxu0 0.0
    %871 = vmatpush1.msra.mxu0 0.0
    %872 = vmatprep.subr.mxu0 0.0
    %873 = vmatpush1.msra.mxu0 0.0
    %874 = vmatprep.subr.mxu0 0.0
    %875 = vmatpush1.msra.mxu0 0.0
    %876 = vmatprep.subr.mxu0 0.0
    %877 = vmatpush1.msra.mxu0 0.0
    %878 = vmatprep.subr.mxu0 0.0
    %879 = vmatpush1.msra.mxu0 0.0
    %880 = vmatprep.subr.mxu0 0.0
    %881 = vmatpush1.msra.mxu0 0.0
    %882 = vmatprep.subr.mxu0 0.0
    %883 = vmatpush1.msra.mxu0 0.0
    %884 = vmatprep.subr.mxu0 0.0
    %885 = vmatpush1.msra.mxu0 0.0
    %886 = vmatprep.subr.mxu0 0.0
    %887 = vmatpush1.msra.mxu0 0.0
    %888 = vmatprep.subr.mxu0 0.0
    %889 = vmatpush1.msra.mxu0 0.0
    %890 = vmatprep.subr.mxu0 0.0
    %891 = vmatpush1.msra.mxu0 0.0
    %892 = vmatprep.subr.mxu0 0.0
    %893 = vmatpush1.msra.mxu0 0.0
    %894 = vmatprep.subr.mxu0 0.0
    %895 = vmatpush1.msra.mxu0 0.0
    %896 = vmatprep.subr.mxu0 0.0
    %897 = vmatpush1.msra.mxu0 0.0
    %898 = vmatprep.subr.mxu0 0.0
    %899 = vmatpush1.msra.mxu0 0.0
    %900 = vmatprep.subr.mxu0 0.0
    %901 = vmatpush1.msra.mxu0 0.0
    %902 = vmatprep.subr.mxu0 0.0
    %903 = vmatpush1.msra.mxu0 0.0
    %904 = vmatprep.subr.mxu0 0.0
    %905 = vmatpush1.msra.mxu0 0.0
    %906 = vmatprep.subr.mxu0 0.0
    %907 = vmatpush1.msra.mxu0 0.0
    %908 = vmatprep.subr.mxu0 0.0
    %909 = vmatpush1.msra.mxu0 0.0
    %910 = vmatprep.subr.mxu0 0.0
    %911 = vmatpush1.msra.mxu0 0.0
    %912 = vmatprep.subr.mxu0 0.0
    %913 = vmatpush1.msra.mxu0 0.0
    %914 = vmatprep.subr.mxu0 0.0
    %915 = vmatpush1.msra.mxu0 0.0
    %916 = vmatprep.subr.mxu0 0.0
    %917 = vmatpush1.msra.mxu0 0.0
    %918 = vmatprep.subr.mxu0 0.0
    %919 = vmatpush1.msra.mxu0 0.0
    %920 = vmatprep.subr.mxu0 0.0
    %921 = vmatpush1.msra.mxu0 0.0
    %922 = vmatprep.subr.mxu0 0.0
    %923 = vmatpush1.msra.mxu0 0.0
    %924 = vmatprep.subr.mxu0 0.0
    %925 = vmatpush1.msra.mxu0 0.0
    %926 = vmatprep.mubr.f32.mxu0 0.0
    %v927 = vand.u32 %v35, 4294901760
    %928 = vmatmul.mubr.f32.gmra.mrb[0].mxu0 %v927
    %v929 = vpop.f32.mrb[0].mxu0
    %v930 = vadd.f32 %v733, %v929
    %v931 = vpop.f32.mrb[0].mxu0
    %932 = vmatprep.mubr.f32.mxu0 0.0
    %v933 = vand.u32 %v38, 4294901760
    %934 = vmatmul.mubr.f32.gmra.mrb[0].mxu0 %v933
    %v935 = vpop.f32.mrb[0].mxu0
    %v936 = vadd.f32 %v741, %v935
    %v937 = vpop.f32.mrb[0].mxu0
    %938 = vmatprep.mubr.f32.mxu0 0.0
    %v939 = vand.u32 %v41, 4294901760
    %940 = vmatmul.mubr.f32.gmra.mrb[0].mxu0 %v939
    %v941 = vpop.f32.mrb[0].mxu0
    %v942 = vadd.f32 %v749, %v941
    %v943 = vpop.f32.mrb[0].mxu0
    %944 = vmatprep.mubr.f32.mxu0 0.0
    %v945 = vand.u32 %v44, 4294901760
    %946 = vmatmul.mubr.f32.gmra.mrb[0].mxu0 %v945
    %v947 = vpop.f32.mrb[0].mxu0
    %v948 = vadd.f32 %v757, %v947
    %v949 = vpop.f32.mrb[0].mxu0
    %950 = vmatprep.mubr.f32.mxu0 0.0
    %v951 = vand.u32 %v47, 4294901760
    %952 = vmatmul.mubr.f32.gmra.mrb[0].mxu0 %v951
    %v953 = vpop.f32.mrb[0].mxu0
    %v954 = vadd.f32 %v765, %v953
    %v955 = vpop.f32.mrb[0].mxu0
    %956 = vmatprep.mubr.f32.mxu0 0.0
    %v957 = vand.u32 %v50, 4294901760
    %958 = vmatmul.mubr.f32.gmra.mrb[0].mxu0 %v957
    %v959 = vpop.f32.mrb[0].mxu0
    %v960 = vadd.f32 %v773, %v959
    %v961 = vpop.f32.mrb[0].mxu0
    %962 = vmatprep.mubr.f32.mxu0 0.0
    %v963 = vand.u32 %v53, 4294901760
    %964 = vmatmul.mubr.f32.gmra.mrb[0].mxu0 %v963
    %v965 = vpop.f32.mrb[0].mxu0
    %v966 = vadd.f32 %v781, %v965
    %v967 = vpop.f32.mrb[0].mxu0
    %968 = vmatprep.mubr.f32.mxu0 0.0
    %v969 = vand.u32 %v56, 4294901760
    %970 = vmatmul.mubr.f32.gmra.mrb[0].mxu0 %v969
    %v971 = vpop.f32.mrb[0].mxu0
    %v972 = vadd.f32 %v789, %v971
    %v973 = vpop.f32.mrb[0].mxu0
    %974 = vmatprep.mubr.f32.mxu0 0.0
    %v975 = vand.u32 %v59, 4294901760
    %976 = vmatmul.mubr.f32.gmra.mrb[0].mxu0 %v975
    %v977 = vpop.f32.mrb[0].mxu0
    %v978 = vadd.f32 %v797, %v977
    %v979 = vpop.f32.mrb[0].mxu0
    %980 = vmatprep.mubr.f32.mxu0 0.0
    %v981 = vand.u32 %v62, 4294901760
    %982 = vmatmul.mubr.f32.gmra.mrb[0].mxu0 %v981
    %v983 = vpop.f32.mrb[0].mxu0
    %v984 = vadd.f32 %v805, %v983
    %v985 = vpop.f32.mrb[0].mxu0
    %986 = vmatprep.mubr.f32.mxu0 0.0
    %v987 = vand.u32 %v65, 4294901760
    %988 = vmatmul.mubr.f32.gmra.mrb[0].mxu0 %v987
    %v989 = vpop.f32.mrb[0].mxu0
    %v990 = vadd.f32 %v813, %v989
    %v991 = vpop.f32.mrb[0].mxu0
    %992 = vmatprep.mubr.f32.mxu0 0.0
    %v993 = vand.u32 %v68, 4294901760
    %994 = vmatmul.mubr.f32.gmra.mrb[0].mxu0 %v993
    %v995 = vpop.f32.mrb[0].mxu0
    %v996 = vadd.f32 %v821, %v995
    %v997 = vpop.f32.mrb[0].mxu0
    %998 = vmatprep.mubr.f32.mxu0 0.0
    %v999 = vand.u32 %v71, 4294901760
    %1000 = vmatmul.mubr.f32.gmra.mrb[0].mxu0 %v999
    %v1001 = vpop.f32.mrb[0].mxu0
    %v1002 = vadd.f32 %v829, %v1001
    %v1003 = vpop.f32.mrb[0].mxu0
    %1004 = vmatprep.mubr.f32.mxu0 0.0
    %v1005 = vand.u32 %v74, 4294901760
    %1006 = vmatmul.mubr.f32.gmra.mrb[0].mxu0 %v1005
    %v1007 = vpop.f32.mrb[0].mxu0
    %v1008 = vadd.f32 %v837, %v1007
    %v1009 = vpop.f32.mrb[0].mxu0
    %1010 = vmatprep.mubr.f32.mxu0 0.0
    %v1011 = vand.u32 %v77, 4294901760
    %1012 = vmatmul.mubr.f32.gmra.mrb[0].mxu0 %v1011
    %v1013 = vpop.f32.mrb[0].mxu0
    %v1014 = vadd.f32 %v845, %v1013
    %v1015 = vpop.f32.mrb[0].mxu0
    %1016 = vmatprep.mubr.f32.mxu0 0.0
    %v1017 = vand.u32 %v80, 4294901760
    %1018 = vmatmul.mubr.f32.gmra.mrb[0].mxu0 %v1017
    %v1019 = vpop.f32.mrb[0].mxu0
    %v1020 = vadd.f32 %v853, %v1019
    %v1021 = vpop.f32.mrb[0].mxu0
    %1022 = vdwg.mxu0
    %1023 = vmatprep.subr.mxu0 0.0
    %v1024 = vand.u32 %v31, 4294901760
    %1025 = vmatpush1.msra.mxu0 %v1024
    %1026 = vmatprep.subr.mxu0 0.0
    %v1027 = vand.u32 %v32, 4294901760
    %1028 = vmatpush1.msra.mxu0 %v1027
    %1029 = vmatprep.subr.mxu0 0.0
    %1030 = vmatpush1.msra.mxu0 0.0
    %1031 = vmatprep.subr.mxu0 0.0
    %1032 = vmatpush1.msra.mxu0 0.0
    %1033 = vmatprep.subr.mxu0 0.0
    %1034 = vmatpush1.msra.mxu0 0.0
    %1035 = vmatprep.subr.mxu0 0.0
    %1036 = vmatpush1.msra.mxu0 0.0
    %1037 = vmatprep.subr.mxu0 0.0
    %1038 = vmatpush1.msra.mxu0 0.0
    %1039 = vmatprep.subr.mxu0 0.0
    %1040 = vmatpush1.msra.mxu0 0.0
    %1041 = vmatprep.subr.mxu0 0.0
    %1042 = vmatpush1.msra.mxu0 0.0
    %1043 = vmatprep.subr.mxu0 0.0
    %1044 = vmatpush1.msra.mxu0 0.0
    %1045 = vmatprep.subr.mxu0 0.0
    %1046 = vmatpush1.msra.mxu0 0.0
    %1047 = vmatprep.subr.mxu0 0.0
    %1048 = vmatpush1.msra.mxu0 0.0
    %1049 = vmatprep.subr.mxu0 0.0
    %1050 = vmatpush1.msra.mxu0 0.0
    %1051 = vmatprep.subr.mxu0 0.0
    %1052 = vmatpush1.msra.mxu0 0.0
    %1053 = vmatprep.subr.mxu0 0.0
    %1054 = vmatpush1.msra.mxu0 0.0
    %1055 = vmatprep.subr.mxu0 0.0
    %1056 = vmatpush1.msra.mxu0 0.0
    %1057 = vmatprep.subr.mxu0 0.0
    %1058 = vmatpush1.msra.mxu0 0.0
    %1059 = vmatprep.subr.mxu0 0.0
    %1060 = vmatpush1.msra.mxu0 0.0
    %1061 = vmatprep.subr.mxu0 0.0
    %1062 = vmatpush1.msra.mxu0 0.0
    %1063 = vmatprep.subr.mxu0 0.0
    %1064 = vmatpush1.msra.mxu0 0.0
    %1065 = vmatprep.subr.mxu0 0.0
    %1066 = vmatpush1.msra.mxu0 0.0
    %1067 = vmatprep.subr.mxu0 0.0
    %1068 = vmatpush1.msra.mxu0 0.0
    %1069 = vmatprep.subr.mxu0 0.0
    %1070 = vmatpush1.msra.mxu0 0.0
    %1071 = vmatprep.subr.mxu0 0.0
    %1072 = vmatpush1.msra.mxu0 0.0
    %1073 = vmatprep.subr.mxu0 0.0
    %1074 = vmatpush1.msra.mxu0 0.0
    %1075 = vmatprep.subr.mxu0 0.0
    %1076 = vmatpush1.msra.mxu0 0.0
    %1077 = vmatprep.subr.mxu0 0.0
    %1078 = vmatpush1.msra.mxu0 0.0
    %1079 = vmatprep.subr.mxu0 0.0
    %1080 = vmatpush1.msra.mxu0 0.0
    %1081 = vmatprep.subr.mxu0 0.0
    %1082 = vmatpush1.msra.mxu0 0.0
    %1083 = vmatprep.subr.mxu0 0.0
    %1084 = vmatpush1.msra.mxu0 0.0
    %1085 = vmatprep.subr.mxu0 0.0
    %1086 = vmatpush1.msra.mxu0 0.0
    %1087 = vmatprep.subr.mxu0 0.0
    %1088 = vmatpush1.msra.mxu0 0.0
    %1089 = vmatprep.mubr.f32.mxu0 0.0
    %v1090 = vand.u32 %v35, 4294901760
    %1091 = vmatmul.mubr.f32.gmra.mrb[0].mxu0 %v1090
    %v1092 = vpop.f32.mrb[0].mxu0
    %v1093 = vadd.f32 %v930, %v1092
    %v1094 = vpop.f32.mrb[0].mxu0
    %1095 = vmatprep.mubr.f32.mxu0 0.0
    %v1096 = vand.u32 %v38, 4294901760
    %1097 = vmatmul.mubr.f32.gmra.mrb[0].mxu0 %v1096
    %v1098 = vpop.f32.mrb[0].mxu0
    %v1099 = vadd.f32 %v936, %v1098
    %v1100 = vpop.f32.mrb[0].mxu0
    %1101 = vmatprep.mubr.f32.mxu0 0.0
    %v1102 = vand.u32 %v41, 4294901760
    %1103 = vmatmul.mubr.f32.gmra.mrb[0].mxu0 %v1102
    %v1104 = vpop.f32.mrb[0].mxu0
    %v1105 = vadd.f32 %v942, %v1104
    %v1106 = vpop.f32.mrb[0].mxu0
    %1107 = vmatprep.mubr.f32.mxu0 0.0
    %v1108 = vand.u32 %v44, 4294901760
    %1109 = vmatmul.mubr.f32.gmra.mrb[0].mxu0 %v1108
    %v1110 = vpop.f32.mrb[0].mxu0
    %v1111 = vadd.f32 %v948, %v1110
    %v1112 = vpop.f32.mrb[0].mxu0
    %1113 = vmatprep.mubr.f32.mxu0 0.0
    %v1114 = vand.u32 %v47, 4294901760
    %1115 = vmatmul.mubr.f32.gmra.mrb[0].mxu0 %v1114
    %v1116 = vpop.f32.mrb[0].mxu0
    %v1117 = vadd.f32 %v954, %v1116
    %v1118 = vpop.f32.mrb[0].mxu0
    %1119 = vmatprep.mubr.f32.mxu0 0.0
    %v1120 = vand.u32 %v50, 4294901760
    %1121 = vmatmul.mubr.f32.gmra.mrb[0].mxu0 %v1120
    %v1122 = vpop.f32.mrb[0].mxu0
    %v1123 = vadd.f32 %v960, %v1122
    %v1124 = vpop.f32.mrb[0].mxu0
    %1125 = vmatprep.mubr.f32.mxu0 0.0
    %v1126 = vand.u32 %v53, 4294901760
    %1127 = vmatmul.mubr.f32.gmra.mrb[0].mxu0 %v1126
    %v1128 = vpop.f32.mrb[0].mxu0
    %v1129 = vadd.f32 %v966, %v1128
    %v1130 = vpop.f32.mrb[0].mxu0
    %1131 = vmatprep.mubr.f32.mxu0 0.0
    %v1132 = vand.u32 %v56, 4294901760
    %1133 = vmatmul.mubr.f32.gmra.mrb[0].mxu0 %v1132
    %v1134 = vpop.f32.mrb[0].mxu0
    %v1135 = vadd.f32 %v972, %v1134
    %v1136 = vpop.f32.mrb[0].mxu0
    %1137 = vmatprep.mubr.f32.mxu0 0.0
    %v1138 = vand.u32 %v59, 4294901760
    %1139 = vmatmul.mubr.f32.gmra.mrb[0].mxu0 %v1138
    %v1140 = vpop.f32.mrb[0].mxu0
    %v1141 = vadd.f32 %v978, %v1140
    %v1142 = vpop.f32.mrb[0].mxu0
    %1143 = vmatprep.mubr.f32.mxu0 0.0
    %v1144 = vand.u32 %v62, 4294901760
    %1145 = vmatmul.mubr.f32.gmra.mrb[0].mxu0 %v1144
    %v1146 = vpop.f32.mrb[0].mxu0
    %v1147 = vadd.f32 %v984, %v1146
    %v1148 = vpop.f32.mrb[0].mxu0
    %1149 = vmatprep.mubr.f32.mxu0 0.0
    %v1150 = vand.u32 %v65, 4294901760
    %1151 = vmatmul.mubr.f32.gmra.mrb[0].mxu0 %v1150
    %v1152 = vpop.f32.mrb[0].mxu0
    %v1153 = vadd.f32 %v990, %v1152
    %v1154 = vpop.f32.mrb[0].mxu0
    %1155 = vmatprep.mubr.f32.mxu0 0.0
    %v1156 = vand.u32 %v68, 4294901760
    %1157 = vmatmul.mubr.f32.gmra.mrb[0].mxu0 %v1156
    %v1158 = vpop.f32.mrb[0].mxu0
    %v1159 = vadd.f32 %v996, %v1158
    %v1160 = vpop.f32.mrb[0].mxu0
    %1161 = vmatprep.mubr.f32.mxu0 0.0
    %v1162 = vand.u32 %v71, 4294901760
    %1163 = vmatmul.mubr.f32.gmra.mrb[0].mxu0 %v1162
    %v1164 = vpop.f32.mrb[0].mxu0
    %v1165 = vadd.f32 %v1002, %v1164
    %v1166 = vpop.f32.mrb[0].mxu0
    %1167 = vmatprep.mubr.f32.mxu0 0.0
    %v1168 = vand.u32 %v74, 4294901760
    %1169 = vmatmul.mubr.f32.gmra.mrb[0].mxu0 %v1168
    %v1170 = vpop.f32.mrb[0].mxu0
    %v1171 = vadd.f32 %v1008, %v1170
    %v1172 = vpop.f32.mrb[0].mxu0
    %1173 = vmatprep.mubr.f32.mxu0 0.0
    %v1174 = vand.u32 %v77, 4294901760
    %1175 = vmatmul.mubr.f32.gmra.mrb[0].mxu0 %v1174
    %v1176 = vpop.f32.mrb[0].mxu0
    %v1177 = vadd.f32 %v1014, %v1176
    %v1178 = vpop.f32.mrb[0].mxu0
    %1179 = vmatprep.mubr.f32.mxu0 0.0
    %v1180 = vand.u32 %v80, 4294901760
    %1181 = vmatmul.mubr.f32.gmra.mrb[0].mxu0 %v1180
    %v1182 = vpop.f32.mrb[0].mxu0
    %v1183 = vadd.f32 %v1020, %v1182
    %v1184 = vpop.f32.mrb[0].mxu0
    %1185 = vdwg.mxu0
    %vm1186 = vcmask 64512
    %1187 = vst.msk [vmem:[#allocation2] sm:$0xff] %vm1186, %v1093
    %1188 = vst.msk [vmem:[#allocation2 + $0x8] sm:$0xff] %vm1186, %v1099
    %1191 = vrot.lane.b32.xlu0 %v1105, 8
    %v1192 = vpop.permute.xlu0 %1191
    %1193 = vrot.lane.b32.xlu0 %v1111, 8
    %v1194 = vpop.permute.xlu0 %1193
    %vm1197 = vcmask 130112
    %1198 = vst.msk [vmem:[#allocation2] sm:$0xff] %vm1197, %v1192
    %1199 = vst.msk [vmem:[#allocation2 + $0x8] sm:$0xff] %vm1197, %v1194
    %1202 = vrot.lane.b32.xlu0 %v1117, 16
    %v1203 = vpop.permute.xlu0 %1202
    %1204 = vrot.lane.b32.xlu0 %v1123, 16
    %v1205 = vpop.permute.xlu0 %1204
    %vm1208 = vcmask 195712
    %1209 = vst.msk [vmem:[#allocation2] sm:$0xff] %vm1208, %v1203
    %1210 = vst.msk [vmem:[#allocation2 + $0x8] sm:$0xff] %vm1208, %v1205
    %1213 = vrot.lane.b32.xlu0 %v1129, 24
    %v1214 = vpop.permute.xlu0 %1213
    %1215 = vrot.lane.b32.xlu0 %v1135, 24
    %v1216 = vpop.permute.xlu0 %1215
    %vm1219 = vcmask 261312
    %1220 = vst.msk [vmem:[#allocation2] sm:$0xff] %vm1219, %v1214
    %1221 = vst.msk [vmem:[#allocation2 + $0x8] sm:$0xff] %vm1219, %v1216
    %1224 = vrot.lane.b32.xlu0 %v1141, 32
    %v1225 = vpop.permute.xlu0 %1224
    %1226 = vrot.lane.b32.xlu0 %v1147, 32
    %v1227 = vpop.permute.xlu0 %1226
    %vm1230 = vcmask 326912
    %1231 = vst.msk [vmem:[#allocation2] sm:$0xff] %vm1230, %v1225
    %1232 = vst.msk [vmem:[#allocation2 + $0x8] sm:$0xff] %vm1230, %v1227
    %1235 = vrot.lane.b32.xlu0 %v1153, 40
    %v1236 = vpop.permute.xlu0 %1235
    %1237 = vrot.lane.b32.xlu0 %v1159, 40
    %v1238 = vpop.permute.xlu0 %1237
    %vm1241 = vcmask 392512
    %1242 = vst.msk [vmem:[#allocation2] sm:$0xff] %vm1241, %v1236
    %1243 = vst.msk [vmem:[#allocation2 + $0x8] sm:$0xff] %vm1241, %v1238
    %1246 = vrot.lane.b32.xlu0 %v1165, 48
    %v1247 = vpop.permute.xlu0 %1246
    %1248 = vrot.lane.b32.xlu0 %v1171, 48
    %v1249 = vpop.permute.xlu0 %1248
    %vm1252 = vcmask 458112
    %1253 = vst.msk [vmem:[#allocation2] sm:$0xff] %vm1252, %v1247
    %1254 = vst.msk [vmem:[#allocation2 + $0x8] sm:$0xff] %vm1252, %v1249
    %1257 = vrot.lane.b32.xlu0 %v1177, 56
    %v1258 = vpop.permute.xlu0 %1257
    %1259 = vrot.lane.b32.xlu0 %v1183, 56
    %v1260 = vpop.permute.xlu0 %1259
    %vm1263 = vcmask 523712
    %1264 = vst.msk [vmem:[#allocation2] sm:$0xff] %vm1263, %v1258
    %1265 = vst.msk [vmem:[#allocation2 + $0x8] sm:$0xff] %vm1263, %v1260
    %v1266 = vld [vmem:[%s0] sm:$0xff]
    %v1267 = vld [vmem:[#allocation2] sm:$0xff]
    %v1268 = vld [vmem:[#allocation2 + $0x8] sm:$0xff]
    %v1270 = vsel %vm33, %v1266, 0
    %1272 = vmatprep.subr.mxu0 0.0
    %v1273 = vand.u32 %v1267, 4294901760
    %1274 = vmatpush1.msra.mxu0 %v1273
    %1275 = vmatprep.subr.mxu0 0.0
    %v1276 = vand.u32 %v1268, 4294901760
    %1277 = vmatpush1.msra.mxu0 %v1276
    %1278 = vmatprep.subr.mxu0 0.0
    %1279 = vmatpush1.msra.mxu0 0.0
    %1280 = vmatprep.subr.mxu0 0.0
    %1281 = vmatpush1.msra.mxu0 0.0
    %1282 = vmatprep.subr.mxu0 0.0
    %1283 = vmatpush1.msra.mxu0 0.0
    %1284 = vmatprep.subr.mxu0 0.0
    %1285 = vmatpush1.msra.mxu0 0.0
    %1286 = vmatprep.subr.mxu0 0.0
    %1287 = vmatpush1.msra.mxu0 0.0
    %1288 = vmatprep.subr.mxu0 0.0
    %1289 = vmatpush1.msra.mxu0 0.0
    %1290 = vmatprep.subr.mxu0 0.0
    %1291 = vmatpush1.msra.mxu0 0.0
    %1292 = vmatprep.subr.mxu0 0.0
    %1293 = vmatpush1.msra.mxu0 0.0
    %1294 = vmatprep.subr.mxu0 0.0
    %1295 = vmatpush1.msra.mxu0 0.0
    %1296 = vmatprep.subr.mxu0 0.0
    %1297 = vmatpush1.msra.mxu0 0.0
    %1298 = vmatprep.subr.mxu0 0.0
    %1299 = vmatpush1.msra.mxu0 0.0
    %1300 = vmatprep.subr.mxu0 0.0
    %1301 = vmatpush1.msra.mxu0 0.0
    %1302 = vmatprep.subr.mxu0 0.0
    %1303 = vmatpush1.msra.mxu0 0.0
    %1304 = vmatprep.subr.mxu0 0.0
    %1305 = vmatpush1.msra.mxu0 0.0
    %1306 = vmatprep.subr.mxu0 0.0
    %1307 = vmatpush1.msra.mxu0 0.0
    %1308 = vmatprep.subr.mxu0 0.0
    %1309 = vmatpush1.msra.mxu0 0.0
    %1310 = vmatprep.subr.mxu0 0.0
    %1311 = vmatpush1.msra.mxu0 0.0
    %1312 = vmatprep.subr.mxu0 0.0
    %1313 = vmatpush1.msra.mxu0 0.0
    %1314 = vmatprep.subr.mxu0 0.0
    %1315 = vmatpush1.msra.mxu0 0.0
    %1316 = vmatprep.subr.mxu0 0.0
    %1317 = vmatpush1.msra.mxu0 0.0
    %1318 = vmatprep.subr.mxu0 0.0
    %1319 = vmatpush1.msra.mxu0 0.0
    %1320 = vmatprep.subr.mxu0 0.0
    %1321 = vmatpush1.msra.mxu0 0.0
    %1322 = vmatprep.subr.mxu0 0.0
    %1323 = vmatpush1.msra.mxu0 0.0
    %1324 = vmatprep.subr.mxu0 0.0
    %1325 = vmatpush1.msra.mxu0 0.0
    %1326 = vmatprep.subr.mxu0 0.0
    %1327 = vmatpush1.msra.mxu0 0.0
    %1328 = vmatprep.subr.mxu0 0.0
    %1329 = vmatpush1.msra.mxu0 0.0
    %1330 = vmatprep.subr.mxu0 0.0
    %1331 = vmatpush1.msra.mxu0 0.0
    %1332 = vmatprep.subr.mxu0 0.0
    %1333 = vmatpush1.msra.mxu0 0.0
    %1334 = vmatprep.subr.mxu0 0.0
    %1335 = vmatpush1.msra.mxu0 0.0
    %1336 = vmatprep.subr.mxu0 0.0
    %1337 = vmatpush1.msra.mxu0 0.0
    %1338 = vmatprep.mubr.f32.mxu0 0.0
    %v1339 = vand.u32 %v1270, 4294901760
    %v1340 = vsub.f32 %v1270, %v1339
    %v1341 = vand.u32 %v1340, 4294901760
    %v1342 = vsub.f32 %v1340, %v1341
    %v1343 = vand.u32 %v1342, 4294901760
    %1344 = vmatmul.mubr.f32.gmra.mrb[0].mxu0 %v1343
    %v1345 = vpop.f32.mrb[0].mxu0
    %v1346 = vadd.f32 0.0, %v1345
    %v1347 = vpop.f32.mrb[0].mxu0
    %1348 = vdwg.mxu0
    %1349 = vmatprep.subr.mxu0 0.0
    %v1350 = vand.u32 %v1267, 4294901760
    %v1351 = vsub.f32 %v1267, %v1350
    %v1352 = vand.u32 %v1351, 4294901760
    %v1353 = vsub.f32 %v1351, %v1352
    %v1354 = vand.u32 %v1353, 4294901760
    %1355 = vmatpush1.msra.mxu0 %v1354
    %1356 = vmatprep.subr.mxu0 0.0
    %v1357 = vand.u32 %v1268, 4294901760
    %v1358 = vsub.f32 %v1268, %v1357
    %v1359 = vand.u32 %v1358, 4294901760
    %v1360 = vsub.f32 %v1358, %v1359
    %v1361 = vand.u32 %v1360, 4294901760
    %1362 = vmatpush1.msra.mxu0 %v1361
    %1363 = vmatprep.subr.mxu0 0.0
    %1364 = vmatpush1.msra.mxu0 0.0
    %1365 = vmatprep.subr.mxu0 0.0
    %1366 = vmatpush1.msra.mxu0 0.0
    %1367 = vmatprep.subr.mxu0 0.0
    %1368 = vmatpush1.msra.mxu0 0.0
    %1369 = vmatprep.subr.mxu0 0.0
    %1370 = vmatpush1.msra.mxu0 0.0
    %1371 = vmatprep.subr.mxu0 0.0
    %1372 = vmatpush1.msra.mxu0 0.0
    %1373 = vmatprep.subr.mxu0 0.0
    %1374 = vmatpush1.msra.mxu0 0.0
    %1375 = vmatprep.subr.mxu0 0.0
    %1376 = vmatpush1.msra.mxu0 0.0
    %1377 = vmatprep.subr.mxu0 0.0
    %1378 = vmatpush1.msra.mxu0 0.0
    %1379 = vmatprep.subr.mxu0 0.0
    %1380 = vmatpush1.msra.mxu0 0.0
    %1381 = vmatprep.subr.mxu0 0.0
    %1382 = vmatpush1.msra.mxu0 0.0
    %1383 = vmatprep.subr.mxu0 0.0
    %1384 = vmatpush1.msra.mxu0 0.0
    %1385 = vmatprep.subr.mxu0 0.0
    %1386 = vmatpush1.msra.mxu0 0.0
    %1387 = vmatprep.subr.mxu0 0.0
    %1388 = vmatpush1.msra.mxu0 0.0
    %1389 = vmatprep.subr.mxu0 0.0
    %1390 = vmatpush1.msra.mxu0 0.0
    %1391 = vmatprep.subr.mxu0 0.0
    %1392 = vmatpush1.msra.mxu0 0.0
    %1393 = vmatprep.subr.mxu0 0.0
    %1394 = vmatpush1.msra.mxu0 0.0
    %1395 = vmatprep.subr.mxu0 0.0
    %1396 = vmatpush1.msra.mxu0 0.0
    %1397 = vmatprep.subr.mxu0 0.0
    %1398 = vmatpush1.msra.mxu0 0.0
    %1399 = vmatprep.subr.mxu0 0.0
    %1400 = vmatpush1.msra.mxu0 0.0
    %1401 = vmatprep.subr.mxu0 0.0
    %1402 = vmatpush1.msra.mxu0 0.0
    %1403 = vmatprep.subr.mxu0 0.0
    %1404 = vmatpush1.msra.mxu0 0.0
    %1405 = vmatprep.subr.mxu0 0.0
    %1406 = vmatpush1.msra.mxu0 0.0
    %1407 = vmatprep.subr.mxu0 0.0
    %1408 = vmatpush1.msra.mxu0 0.0
    %1409 = vmatprep.subr.mxu0 0.0
    %1410 = vmatpush1.msra.mxu0 0.0
    %1411 = vmatprep.subr.mxu0 0.0
    %1412 = vmatpush1.msra.mxu0 0.0
    %1413 = vmatprep.subr.mxu0 0.0
    %1414 = vmatpush1.msra.mxu0 0.0
    %1415 = vmatprep.subr.mxu0 0.0
    %1416 = vmatpush1.msra.mxu0 0.0
    %1417 = vmatprep.subr.mxu0 0.0
    %1418 = vmatpush1.msra.mxu0 0.0
    %1419 = vmatprep.subr.mxu0 0.0
    %1420 = vmatpush1.msra.mxu0 0.0
    %1421 = vmatprep.subr.mxu0 0.0
    %1422 = vmatpush1.msra.mxu0 0.0
    %1423 = vmatprep.mubr.f32.mxu0 0.0
    %v1424 = vand.u32 %v1270, 4294901760
    %1425 = vmatmul.mubr.f32.gmra.mrb[0].mxu0 %v1424
    %v1426 = vpop.f32.mrb[0].mxu0
    %v1427 = vadd.f32 %v1346, %v1426
    %v1428 = vpop.f32.mrb[0].mxu0
    %1429 = vdwg.mxu0
    %1430 = vmatprep.subr.mxu0 0.0
    %v1431 = vand.u32 %v1267, 4294901760
    %v1432 = vsub.f32 %v1267, %v1431
    %1433 = vmatpush1.msra.mxu0 %v1432
    %1434 = vmatprep.subr.mxu0 0.0
    %v1435 = vand.u32 %v1268, 4294901760
    %v1436 = vsub.f32 %v1268, %v1435
    %1437 = vmatpush1.msra.mxu0 %v1436
    %1438 = vmatprep.subr.mxu0 0.0
    %1439 = vmatpush1.msra.mxu0 0.0
    %1440 = vmatprep.subr.mxu0 0.0
    %1441 = vmatpush1.msra.mxu0 0.0
    %1442 = vmatprep.subr.mxu0 0.0
    %1443 = vmatpush1.msra.mxu0 0.0
    %1444 = vmatprep.subr.mxu0 0.0
    %1445 = vmatpush1.msra.mxu0 0.0
    %1446 = vmatprep.subr.mxu0 0.0
    %1447 = vmatpush1.msra.mxu0 0.0
    %1448 = vmatprep.subr.mxu0 0.0
    %1449 = vmatpush1.msra.mxu0 0.0
    %1450 = vmatprep.subr.mxu0 0.0
    %1451 = vmatpush1.msra.mxu0 0.0
    %1452 = vmatprep.subr.mxu0 0.0
    %1453 = vmatpush1.msra.mxu0 0.0
    %1454 = vmatprep.subr.mxu0 0.0
    %1455 = vmatpush1.msra.mxu0 0.0
    %1456 = vmatprep.subr.mxu0 0.0
    %1457 = vmatpush1.msra.mxu0 0.0
    %1458 = vmatprep.subr.mxu0 0.0
    %1459 = vmatpush1.msra.mxu0 0.0
    %1460 = vmatprep.subr.mxu0 0.0
    %1461 = vmatpush1.msra.mxu0 0.0
    %1462 = vmatprep.subr.mxu0 0.0
    %1463 = vmatpush1.msra.mxu0 0.0
    %1464 = vmatprep.subr.mxu0 0.0
    %1465 = vmatpush1.msra.mxu0 0.0
    %1466 = vmatprep.subr.mxu0 0.0
    %1467 = vmatpush1.msra.mxu0 0.0
    %1468 = vmatprep.subr.mxu0 0.0
    %1469 = vmatpush1.msra.mxu0 0.0
    %1470 = vmatprep.subr.mxu0 0.0
    %1471 = vmatpush1.msra.mxu0 0.0
    %1472 = vmatprep.subr.mxu0 0.0
    %1473 = vmatpush1.msra.mxu0 0.0
    %1474 = vmatprep.subr.mxu0 0.0
    %1475 = vmatpush1.msra.mxu0 0.0
    %1476 = vmatprep.subr.mxu0 0.0
    %1477 = vmatpush1.msra.mxu0 0.0
    %1478 = vmatprep.subr.mxu0 0.0
    %1479 = vmatpush1.msra.mxu0 0.0
    %1480 = vmatprep.subr.mxu0 0.0
    %1481 = vmatpush1.msra.mxu0 0.0
    %1482 = vmatprep.subr.mxu0 0.0
    %1483 = vmatpush1.msra.mxu0 0.0
    %1484 = vmatprep.subr.mxu0 0.0
    %1485 = vmatpush1.msra.mxu0 0.0
    %1486 = vmatprep.subr.mxu0 0.0
    %1487 = vmatpush1.msra.mxu0 0.0
    %1488 = vmatprep.subr.mxu0 0.0
    %1489 = vmatpush1.msra.mxu0 0.0
    %1490 = vmatprep.subr.mxu0 0.0
    %1491 = vmatpush1.msra.mxu0 0.0
    %1492 = vmatprep.subr.mxu0 0.0
    %1493 = vmatpush1.msra.mxu0 0.0
    %1494 = vmatprep.subr.mxu0 0.0
    %1495 = vmatpush1.msra.mxu0 0.0
    %1496 = vmatprep.subr.mxu0 0.0
    %1497 = vmatpush1.msra.mxu0 0.0
    %1498 = vmatprep.mubr.f32.mxu0 0.0
    %v1499 = vand.u32 %v1270, 4294901760
    %v1500 = vsub.f32 %v1270, %v1499
    %1501 = vmatmul.mubr.f32.gmra.mrb[0].mxu0 %v1500
    %v1502 = vpop.f32.mrb[0].mxu0
    %v1503 = vadd.f32 %v1427, %v1502
    %v1504 = vpop.f32.mrb[0].mxu0
    %1505 = vdwg.mxu0
    %1506 = vmatprep.subr.mxu0 0.0
    %v1507 = vand.u32 %v1267, 4294901760
    %1508 = vmatpush1.msra.mxu0 %v1507
    %1509 = vmatprep.subr.mxu0 0.0
    %v1510 = vand.u32 %v1268, 4294901760
    %1511 = vmatpush1.msra.mxu0 %v1510
    %1512 = vmatprep.subr.mxu0 0.0
    %1513 = vmatpush1.msra.mxu0 0.0
    %1514 = vmatprep.subr.mxu0 0.0
    %1515 = vmatpush1.msra.mxu0 0.0
    %1516 = vmatprep.subr.mxu0 0.0
    %1517 = vmatpush1.msra.mxu0 0.0
    %1518 = vmatprep.subr.mxu0 0.0
    %1519 = vmatpush1.msra.mxu0 0.0
    %1520 = vmatprep.subr.mxu0 0.0
    %1521 = vmatpush1.msra.mxu0 0.0
    %1522 = vmatprep.subr.mxu0 0.0
    %1523 = vmatpush1.msra.mxu0 0.0
    %1524 = vmatprep.subr.mxu0 0.0
    %1525 = vmatpush1.msra.mxu0 0.0
    %1526 = vmatprep.subr.mxu0 0.0
    %1527 = vmatpush1.msra.mxu0 0.0
    %1528 = vmatprep.subr.mxu0 0.0
    %1529 = vmatpush1.msra.mxu0 0.0
    %1530 = vmatprep.subr.mxu0 0.0
    %1531 = vmatpush1.msra.mxu0 0.0
    %1532 = vmatprep.subr.mxu0 0.0
    %1533 = vmatpush1.msra.mxu0 0.0
    %1534 = vmatprep.subr.mxu0 0.0
    %1535 = vmatpush1.msra.mxu0 0.0
    %1536 = vmatprep.subr.mxu0 0.0
    %1537 = vmatpush1.msra.mxu0 0.0
    %1538 = vmatprep.subr.mxu0 0.0
    %1539 = vmatpush1.msra.mxu0 0.0
    %1540 = vmatprep.subr.mxu0 0.0
    %1541 = vmatpush1.msra.mxu0 0.0
    %1542 = vmatprep.subr.mxu0 0.0
    %1543 = vmatpush1.msra.mxu0 0.0
    %1544 = vmatprep.subr.mxu0 0.0
    %1545 = vmatpush1.msra.mxu0 0.0
    %1546 = vmatprep.subr.mxu0 0.0
    %1547 = vmatpush1.msra.mxu0 0.0
    %1548 = vmatprep.subr.mxu0 0.0
    %1549 = vmatpush1.msra.mxu0 0.0
    %1550 = vmatprep.subr.mxu0 0.0
    %1551 = vmatpush1.msra.mxu0 0.0
    %1552 = vmatprep.subr.mxu0 0.0
    %1553 = vmatpush1.msra.mxu0 0.0
    %1554 = vmatprep.subr.mxu0 0.0
    %1555 = vmatpush1.msra.mxu0 0.0
    %1556 = vmatprep.subr.mxu0 0.0
    %1557 = vmatpush1.msra.mxu0 0.0
    %1558 = vmatprep.subr.mxu0 0.0
    %1559 = vmatpush1.msra.mxu0 0.0
    %1560 = vmatprep.subr.mxu0 0.0
    %1561 = vmatpush1.msra.mxu0 0.0
    %1562 = vmatprep.subr.mxu0 0.0
    %1563 = vmatpush1.msra.mxu0 0.0
    %1564 = vmatprep.subr.mxu0 0.0
    %1565 = vmatpush1.msra.mxu0 0.0
    %1566 = vmatprep.subr.mxu0 0.0
    %1567 = vmatpush1.msra.mxu0 0.0
    %1568 = vmatprep.subr.mxu0 0.0
    %1569 = vmatpush1.msra.mxu0 0.0
    %1570 = vmatprep.subr.mxu0 0.0
    %1571 = vmatpush1.msra.mxu0 0.0
    %1572 = vmatprep.mubr.f32.mxu0 0.0
    %v1573 = vand.u32 %v1270, 4294901760
    %v1574 = vsub.f32 %v1270, %v1573
    %v1575 = vand.u32 %v1574, 4294901760
    %1576 = vmatmul.mubr.f32.gmra.mrb[0].mxu0 %v1575
    %v1577 = vpop.f32.mrb[0].mxu0
    %v1578 = vadd.f32 %v1503, %v1577
    %v1579 = vpop.f32.mrb[0].mxu0
    %1580 = vdwg.mxu0
    %1581 = vmatprep.subr.mxu0 0.0
    %v1582 = vand.u32 %v1267, 4294901760
    %v1583 = vsub.f32 %v1267, %v1582
    %v1584 = vand.u32 %v1583, 4294901760
    %1585 = vmatpush1.msra.mxu0 %v1584
    %1586 = vmatprep.subr.mxu0 0.0
    %v1587 = vand.u32 %v1268, 4294901760
    %v1588 = vsub.f32 %v1268, %v1587
    %v1589 = vand.u32 %v1588, 4294901760
    %1590 = vmatpush1.msra.mxu0 %v1589
    %1591 = vmatprep.subr.mxu0 0.0
    %1592 = vmatpush1.msra.mxu0 0.0
    %1593 = vmatprep.subr.mxu0 0.0
    %1594 = vmatpush1.msra.mxu0 0.0
    %1595 = vmatprep.subr.mxu0 0.0
    %1596 = vmatpush1.msra.mxu0 0.0
    %1597 = vmatprep.subr.mxu0 0.0
    %1598 = vmatpush1.msra.mxu0 0.0
    %1599 = vmatprep.subr.mxu0 0.0
    %1600 = vmatpush1.msra.mxu0 0.0
    %1601 = vmatprep.subr.mxu0 0.0
    %1602 = vmatpush1.msra.mxu0 0.0
    %1603 = vmatprep.subr.mxu0 0.0
    %1604 = vmatpush1.msra.mxu0 0.0
    %1605 = vmatprep.subr.mxu0 0.0
    %1606 = vmatpush1.msra.mxu0 0.0
    %1607 = vmatprep.subr.mxu0 0.0
    %1608 = vmatpush1.msra.mxu0 0.0
    %1609 = vmatprep.subr.mxu0 0.0
    %1610 = vmatpush1.msra.mxu0 0.0
    %1611 = vmatprep.subr.mxu0 0.0
    %1612 = vmatpush1.msra.mxu0 0.0
    %1613 = vmatprep.subr.mxu0 0.0
    %1614 = vmatpush1.msra.mxu0 0.0
    %1615 = vmatprep.subr.mxu0 0.0
    %1616 = vmatpush1.msra.mxu0 0.0
    %1617 = vmatprep.subr.mxu0 0.0
    %1618 = vmatpush1.msra.mxu0 0.0
    %1619 = vmatprep.subr.mxu0 0.0
    %1620 = vmatpush1.msra.mxu0 0.0
    %1621 = vmatprep.subr.mxu0 0.0
    %1622 = vmatpush1.msra.mxu0 0.0
    %1623 = vmatprep.subr.mxu0 0.0
    %1624 = vmatpush1.msra.mxu0 0.0
    %1625 = vmatprep.subr.mxu0 0.0
    %1626 = vmatpush1.msra.mxu0 0.0
    %1627 = vmatprep.subr.mxu0 0.0
    %1628 = vmatpush1.msra.mxu0 0.0
    %1629 = vmatprep.subr.mxu0 0.0
    %1630 = vmatpush1.msra.mxu0 0.0
    %1631 = vmatprep.subr.mxu0 0.0
    %1632 = vmatpush1.msra.mxu0 0.0
    %1633 = vmatprep.subr.mxu0 0.0
    %1634 = vmatpush1.msra.mxu0 0.0
    %1635 = vmatprep.subr.mxu0 0.0
    %1636 = vmatpush1.msra.mxu0 0.0
    %1637 = vmatprep.subr.mxu0 0.0
    %1638 = vmatpush1.msra.mxu0 0.0
    %1639 = vmatprep.subr.mxu0 0.0
    %1640 = vmatpush1.msra.mxu0 0.0
    %1641 = vmatprep.subr.mxu0 0.0
    %1642 = vmatpush1.msra.mxu0 0.0
    %1643 = vmatprep.subr.mxu0 0.0
    %1644 = vmatpush1.msra.mxu0 0.0
    %1645 = vmatprep.subr.mxu0 0.0
    %1646 = vmatpush1.msra.mxu0 0.0
    %1647 = vmatprep.subr.mxu0 0.0
    %1648 = vmatpush1.msra.mxu0 0.0
    %1649 = vmatprep.subr.mxu0 0.0
    %1650 = vmatpush1.msra.mxu0 0.0
    %1651 = vmatprep.mubr.f32.mxu0 0.0
    %v1652 = vand.u32 %v1270, 4294901760
    %1653 = vmatmul.mubr.f32.gmra.mrb[0].mxu0 %v1652
    %v1654 = vpop.f32.mrb[0].mxu0
    %v1655 = vadd.f32 %v1578, %v1654
    %v1656 = vpop.f32.mrb[0].mxu0
    %1657 = vdwg.mxu0
    %1658 = vmatprep.subr.mxu0 0.0
    %v1659 = vand.u32 %v1267, 4294901760
    %1660 = vmatpush1.msra.mxu0 %v1659
    %1661 = vmatprep.subr.mxu0 0.0
    %v1662 = vand.u32 %v1268, 4294901760
    %1663 = vmatpush1.msra.mxu0 %v1662
    %1664 = vmatprep.subr.mxu0 0.0
    %1665 = vmatpush1.msra.mxu0 0.0
    %1666 = vmatprep.subr.mxu0 0.0
    %1667 = vmatpush1.msra.mxu0 0.0
    %1668 = vmatprep.subr.mxu0 0.0
    %1669 = vmatpush1.msra.mxu0 0.0
    %1670 = vmatprep.subr.mxu0 0.0
    %1671 = vmatpush1.msra.mxu0 0.0
    %1672 = vmatprep.subr.mxu0 0.0
    %1673 = vmatpush1.msra.mxu0 0.0
    %1674 = vmatprep.subr.mxu0 0.0
    %1675 = vmatpush1.msra.mxu0 0.0
    %1676 = vmatprep.subr.mxu0 0.0
    %1677 = vmatpush1.msra.mxu0 0.0
    %1678 = vmatprep.subr.mxu0 0.0
    %1679 = vmatpush1.msra.mxu0 0.0
    %1680 = vmatprep.subr.mxu0 0.0
    %1681 = vmatpush1.msra.mxu0 0.0
    %1682 = vmatprep.subr.mxu0 0.0
    %1683 = vmatpush1.msra.mxu0 0.0
    %1684 = vmatprep.subr.mxu0 0.0
    %1685 = vmatpush1.msra.mxu0 0.0
    %1686 = vmatprep.subr.mxu0 0.0
    %1687 = vmatpush1.msra.mxu0 0.0
    %1688 = vmatprep.subr.mxu0 0.0
    %1689 = vmatpush1.msra.mxu0 0.0
    %1690 = vmatprep.subr.mxu0 0.0
    %1691 = vmatpush1.msra.mxu0 0.0
    %1692 = vmatprep.subr.mxu0 0.0
    %1693 = vmatpush1.msra.mxu0 0.0
    %1694 = vmatprep.subr.mxu0 0.0
    %1695 = vmatpush1.msra.mxu0 0.0
    %1696 = vmatprep.subr.mxu0 0.0
    %1697 = vmatpush1.msra.mxu0 0.0
    %1698 = vmatprep.subr.mxu0 0.0
    %1699 = vmatpush1.msra.mxu0 0.0
    %1700 = vmatprep.subr.mxu0 0.0
    %1701 = vmatpush1.msra.mxu0 0.0
    %1702 = vmatprep.subr.mxu0 0.0
    %1703 = vmatpush1.msra.mxu0 0.0
    %1704 = vmatprep.subr.mxu0 0.0
    %1705 = vmatpush1.msra.mxu0 0.0
    %1706 = vmatprep.subr.mxu0 0.0
    %1707 = vmatpush1.msra.mxu0 0.0
    %1708 = vmatprep.subr.mxu0 0.0
    %1709 = vmatpush1.msra.mxu0 0.0
    %1710 = vmatprep.subr.mxu0 0.0
    %1711 = vmatpush1.msra.mxu0 0.0
    %1712 = vmatprep.subr.mxu0 0.0
    %1713 = vmatpush1.msra.mxu0 0.0
    %1714 = vmatprep.subr.mxu0 0.0
    %1715 = vmatpush1.msra.mxu0 0.0
    %1716 = vmatprep.subr.mxu0 0.0
    %1717 = vmatpush1.msra.mxu0 0.0
    %1718 = vmatprep.subr.mxu0 0.0
    %1719 = vmatpush1.msra.mxu0 0.0
    %1720 = vmatprep.subr.mxu0 0.0
    %1721 = vmatpush1.msra.mxu0 0.0
    %1722 = vmatprep.subr.mxu0 0.0
    %1723 = vmatpush1.msra.mxu0 0.0
    %1724 = vmatprep.mubr.f32.mxu0 0.0
    %v1725 = vand.u32 %v1270, 4294901760
    %1726 = vmatmul.mubr.f32.gmra.mrb[0].mxu0 %v1725
    %v1727 = vpop.f32.mrb[0].mxu0
    %v1728 = vadd.f32 %v1655, %v1727
    %v1729 = vpop.f32.mrb[0].mxu0
    %1730 = vdwg.mxu0
    %vm1731 = vcmask 523264
    %1732 = vst.msk [vmem:[#allocation3] sm:$0xff] %vm1731, %v1728
    // Predicated region
    $region14: #{tpu_custom_call.1} parent=1 // pred_check
      _
    $region15: #{tpu_custom_call.1} parent=1 // pred_check_branch
      %1734 = sbr.rel (0) target = $region17
    $region16: #{tpu_custom_call.1} parent=1 // pred_region
      %s1736 = ssub.s32 128, 128
      %1737 = vsyncadd [#allocation4], %s1736
      %s1739 = sshll.u32 [#allocation3], 4
      %s1740 = int_to_ptr.vmem [resolvable:$true] %s1739
      %1742 = dma.vmem_to_hbm [thread:$0]  %s1740, 128, %s3, [#allocation4]
    $region17: #{tpu_custom_call.1} parent=1 // pred_fallthru
      _
    // Predicated region
    $region18: #{tpu_custom_call.1} parent=1 // pred_check
      _
    $region19: #{tpu_custom_call.1} parent=1 // pred_check_branch
      %1744 = sbr.rel (0) target = $region21
    $region20: #{tpu_custom_call.1} parent=1 // pred_region
      %1745 = dma.done [#allocation4], 128
    $region21: #{tpu_custom_call.1} parent=1 // pred_fallthru
      _
    %1746 = vsyncpa [#allocation4], 1

</llo_original>
